<compile_context>
chip_gen: v7x
topology: tpu7x:2x2x1
jax: 0.10.0
libtpu: 0.0.40
codegen_flags: <defaults>
</compile_context>

<pallas_src>
import functools

import numpy as np
import jax
import jax.numpy as jnp
from jax.experimental import pallas as pl
from jax.experimental.pallas import tpu as pltpu

_HAS_BUFFERED = hasattr(pl, "Buffered")


# ------------------------------ relative shift -------------------------------- #
def _rel_shift(bd, mode):
    """bd: (N, T, 2T-1) -> (N, T, T) with out[n, i, j] = bd[n, i, j - i + T - 1].

    mode == "reshape": classic Transformer-XL skew (pad one zero column, view as
    (2T, T), drop the first row, view back, keep the first T columns) -- a constant
    number of relayouts regardless of T.
    mode == "slice": T static lane slices + concat -- conservative fallback using only
    ops already proven to lower (O(T) relayouts).
    """
    N, T, W = bd.shape
    if mode == "reshape":
        zero = jnp.zeros((N, T, 1), bd.dtype)
        x = jnp.concatenate([zero, bd], axis=-1)            # (N, T, 2T)
        x = x.reshape(N, 2 * T, T)[:, 1:, :]                # (N, 2T-1, T)
        x = x.reshape(N, T, 2 * T - 1)
        return x[:, :, :T]
    rows = [bd[:, i:i + 1, T - 1 - i: 2 * T - 1 - i] for i in range(T)]
    return jnp.concatenate(rows, axis=1)


# -------------------------------- Pallas kernel -------------------------------- #
def _mhsa_kernel(x_ref, mb_ref, w_in_ref, b_in_ref, p_ref, bu_ref, bv_ref,
                 w_out_ref, b_out_ref, o_ref, *, num_heads, head_dim, rel_shift_mode):
    Bt, T, D = x_ref.shape
    H, hd = num_heads, head_dim
    rows = Bt * T                                     # batch*time rows fed to the MXU

    x = x_ref[...]                                    # (Bt, T, D) f32 residual input
    x2d = x.reshape(rows, D)                          # leading-dim merge only

    # In-projection: Scaling (scale/shift) and the 1/sqrt(hd) q-scale were folded into
    # W_in / b_in offline, so one wide MXU matmul (K = D, M = Bt*T) does it all.
    w_in = w_in_ref[...]
    mm = w_in.dtype                                   # bf16 operands, f32 accumulation
    proj = jnp.dot(x2d.astype(mm), w_in,
                   preferred_element_type=jnp.float32) + b_in_ref[...]    # (rows, 3D)

    # Head-major split: one 128-aligned lane slice per head, stacked to (H, rows, hd).
    # Deliberately kept as slices+stack (instead of a minor-dim reshape / einshape):
    # it doubles as the (rows, H, hd) -> (H, rows, hd) transpose, so the attention
    # einsums below need no further relayout, and it lowers robustly.
    def heads(off):
        return jnp.stack(
            [proj[:, off + h * hd: off + (h + 1) * hd] for h in range(H)], axis=0)

    q = heads(0)            # already carries scale / sm_scale via the W_in fold
    k = heads(D)
    v = heads(2 * D)

    p = p_ref[...]                                    # (H, 2T-1, hd), pre-projected
    q_u = (q + bu_ref[...]).astype(mm)                # (H, rows, hd)
    q_v = (q + bv_ref[...]).astype(mm)

    n = H * Bt
    # Content scores: regroup (H, Bt*T, hd) -> (H*Bt, T, hd) (pure leading-dim regroup)
    # so one single-batch-dim MXU einsum attends within each (head, batch) block.
    ac = jnp.einsum('nid,njd->nij',
                    q_u.reshape(n, T, hd), k.astype(mm).reshape(n, T, hd),
                    preferred_element_type=jnp.float32)               # (n, T, T)
    # Positional scores mix no rows, so the head axis alone batches this one.
    bd = jnp.einsum('hid,hrd->hir', q_v, p,
                    preferred_element_type=jnp.float32)               # (H, rows, 2T-1)
    bd = _rel_shift(bd.reshape(n, T, 2 * T - 1), rel_shift_mode)      # (n, T, T)

    # Additive key-padding bias (0 valid / -1e9 padded) precomputed in the wrapper.
    mb = jnp.broadcast_to(mb_ref[...][None], (H, Bt, 1, T)).reshape(n, 1, T)
    score = ac + bd + mb                                              # (n, T, T) f32

    m = jnp.max(score, axis=-1, keepdims=True)
    e = jnp.exp(score - m)
    # Approximate EUP reciprocal: rows sum to 1 only to ~1e-3 (fine for inference).
    attn = e * pl.reciprocal(jnp.sum(e, axis=-1, keepdims=True), approx=True)

    ctx = jnp.einsum('nij,njd->nid', attn.astype(mm),
                     v.reshape(n, T, hd).astype(mm),
                     preferred_element_type=jnp.float32)              # (n, T, hd)
    ctx = ctx.reshape(H, rows, hd)
    ctx2d = jnp.concatenate([ctx[h] for h in range(H)], axis=-1)      # (rows, D)

    w_out = w_out_ref[...]
    out = jnp.dot(ctx2d.astype(w_out.dtype), w_out,
                  preferred_element_type=jnp.float32) + b_out_ref[...]
    # Dropout on attention probs / module output omitted (inference semantics).
    o_ref[...] = (x + out.reshape(Bt, T, D)).astype(o_ref.dtype)


# ------------------------------ sizing helpers --------------------------------- #
def _vmem_estimate(Bt, T, D, H, mm_bytes):
    """Rough per-grid-step VMEM resident set in bytes (for Bt / vmem_limit selection)."""
    f32, hd, W, rows = 4, D // H, 2 * T - 1, Bt * T
    weights = (D * 3 * D + D * D + H * W * hd) * mm_bytes + 5 * D * f32
    io = 2 * 2 * rows * D * f32 + 2 * Bt * T * f32       # in/out blocks (double buffered)
    tmp = rows * 3 * D * f32                              # proj
    tmp += 6 * H * rows * hd * f32                        # q, k, v, q_u, q_v (+ casts)
    tmp += 3 * H * rows * W * f32                         # bd + rel_shift copies
    tmp += 4 * H * rows * T * f32                         # ac, score, e, attn
    tmp += 2 * rows * D * f32                             # ctx, out
    return 2 * weights + io + tmp                         # worst case: weights double buffered


def _physical_vmem_bytes():
    try:
        return int(pltpu.get_tpu_info().vmem_capacity_bytes)
    except Exception:
        return 64 * 1024 * 1024                           # conservative (v7x per-core VMEM)


def _pick_batch_tile(B, T, D, H, mm_bytes, budget):
    """Smallest divisor Bt of B with Bt*T >= 256 rows (efficient MXU M on v6e/v7x,
    >= 2x the v5e minimum) that fits `budget`; else the largest divisor that fits."""
    divisors = [d for d in range(1, B + 1) if B % d == 0]
    fit = [d for d in divisors if _vmem_estimate(d, T, D, H, mm_bytes) <= budget] or [1]
    for d in fit:
        if d * T >= 256:
            return d
    return fit[-1]


# ---------------------------------- wrapper ------------------------------------ #
def mhsa_module_forward(inputs, mask, params, *, num_heads, mm_dtype=jnp.bfloat16):
    """inputs: (B, T, D) f32; mask: (B, T, 1) bool, True = valid position.

    mm_dtype is the MXU operand dtype (bf16 by default; accumulation is always f32,
    softmax / elementwise stay f32)."""
    B, T, D = inputs.shape
    H = num_heads
    hd = D // H
    f32 = jnp.float32
    sm_scale = 1.0 / float(hd) ** 0.5

    # Relative positional table slice: pe[2049 - T : 2048 + T] for max_len = 2048.
    pe = params["pe"]
    max_len = (pe.shape[0] - 1) // 2
    pos_emb = pe[max_len + 1 - T: max_len + T].astype(f32)            # (2T-1, D)
    # Batch-independent pos projection hoisted out of the kernel, head-major.
    p = (pos_emb @ params["w_pos"].astype(f32)).reshape(2 * T - 1, H, hd)
    p = jnp.transpose(p, (1, 0, 2)).astype(mm_dtype)                  # (H, 2T-1, hd)

    # Fold the Scaling layer and the 1/sqrt(hd) attention scale into the in-projection:
    #   (scale*x + shift) @ W_in + b_in == x @ (diag(scale) @ W_in) + (shift @ W_in + b_in)
    # and scaling the q columns / pos biases by sm_scale removes the (n,T,T) multiply.
    scale = params["scale"].reshape(1, D).astype(f32)
    shift = params["shift"].reshape(1, D).astype(f32)
    w_in = params["w_in"].astype(f32)
    b_in = params["b_in"].reshape(1, 3 * D).astype(f32) + shift @ w_in
    w_in = scale.reshape(D, 1) * w_in
    q_cols = jnp.concatenate([jnp.full((1, D), sm_scale, f32),
                              jnp.ones((1, 2 * D), f32)], axis=1)
    w_in = (w_in * q_cols).astype(mm_dtype)
    b_in = b_in * q_cols                                              # stays f32
    bias_u = (sm_scale * params["bias_u"]).reshape(H, 1, hd).astype(f32)
    bias_v = (sm_scale * params["bias_v"]).reshape(H, 1, hd).astype(f32)
    w_out = params["w_out"].astype(mm_dtype)
    b_out = params["b_out"].reshape(1, D).astype(f32)

    # Additive key-padding bias computed once outside the kernel.
    # TODO(synk): reference masked_fill uses -inf; the finite -1e9 keeps fully padded
    # rows at a uniform distribution instead of NaN.
    mask_bias = jnp.where(mask[:, :, 0], 0.0, -1e9).astype(f32)[:, None, :]   # (B, 1, T)

    mm_bytes = jnp.dtype(mm_dtype).itemsize
    phys_vmem = _physical_vmem_bytes()
    Bt = _pick_batch_tile(B, T, D, H, mm_bytes, budget=phys_vmem // 2)
    est = _vmem_estimate(Bt, T, D, H, mm_bytes)
    vmem_limit = int(min(phys_vmem * 3 // 4,
                         max(32 * 1024 * 1024, est * 3 // 2 + (4 << 20))))

    def _call(fast):
        kernel = functools.partial(
            _mhsa_kernel, num_heads=H, head_dim=hd,
            rel_shift_mode="reshape" if fast else "slice")

        def const_spec(shape):
            index_map = lambda b: (0,) * len(shape)
            if fast and _HAS_BUFFERED:
                # Constant-index weight blocks never re-fetch: single-buffer them to
                # halve their VMEM footprint (matters most on v7x's 64 MiB).
                return pl.BlockSpec(shape, index_map, pipeline_mode=pl.Buffered(1))
            return pl.BlockSpec(shape, index_map)

        return pl.pallas_call(
            kernel,
            out_shape=jax.ShapeDtypeStruct((B, T, D), inputs.dtype),
            grid=(B // Bt,),
            in_specs=[
                pl.BlockSpec((Bt, T, D), lambda b: (b, 0, 0)),    # inputs (residual)
                pl.BlockSpec((Bt, 1, T), lambda b: (b, 0, 0)),    # additive key-pad bias
                const_spec((D, 3 * D)),                           # W_in  (scaling folded)
                const_spec((1, 3 * D)),                           # b_in  (scaling folded)
                const_spec((H, 2 * T - 1, hd)),                   # p = pos_emb @ W_pos
                const_spec((H, 1, hd)),                           # pos_bias_u * sm_scale
                const_spec((H, 1, hd)),                           # pos_bias_v * sm_scale
                const_spec((D, D)),                               # W_out
                const_spec((1, D)),                               # b_out
            ],
            out_specs=pl.BlockSpec((Bt, T, D), lambda b: (b, 0, 0)),
            compiler_params=pltpu.CompilerParams(
                dimension_semantics=("parallel",),
                vmem_limit_bytes=vmem_limit),
        )(inputs, mask_bias, w_in, b_in, p, bias_u, bias_v, w_out, b_out)

    # TODO(synk): for long T add a query-tile grid axis with online softmax (bounds the
    # (n,T,T)/(n,T,2T-1) temporaries), and on v7x with B == 1 an extra "parallel" axis
    # (heads / q-tiles) so both TensorCores stay busy.
    try:
        out = _call(True)
        jax.block_until_ready(out)
        return out
    except Exception:
        # Conservative fallback (identical math): per-row-slice rel_shift and default
        # double-buffered weight blocks, for jax builds without minor-dim reshape /
        # pl.Buffered(1) lowering support. Only the relayout strategy differs.
        return _call(False)


# ----------------------------- pure-JAX reference ------------------------------- #
def mhsa_reference(inputs, mask, params, *, num_heads):
    B, T, D = inputs.shape
    hd = D // num_heads
    pe = params["pe"]
    max_len = (pe.shape[0] - 1) // 2
    pos = pe[max_len + 1 - T: max_len + T]            # (2T-1, D)

    x2 = params["scale"] * inputs + params["shift"]
    proj = x2 @ params["w_in"] + params["b_in"]
    q, k, v = proj[..., :D], proj[..., D:2 * D], proj[..., 2 * D:]
    p = pos @ params["w_pos"]

    split = lambda t: t.reshape(B, T, num_heads, hd)
    qh, kh, vh = split(q), split(k), split(v)
    ph = p.reshape(2 * T - 1, num_heads, hd)
    qu = qh + params["bias_u"].reshape(1, 1, num_heads, hd)
    qv = qh + params["bias_v"].reshape(1, 1, num_heads, hd)

    ac = jnp.einsum("bihd,bjhd->bhij", qu, kh)
    bd = jnp.einsum("bihd,rhd->bhir", qv, ph)
    idx = jnp.arange(T)[None, :] - jnp.arange(T)[:, None] + (T - 1)   # (T, T) rel index
    idx = jnp.broadcast_to(idx[None, None], (B, num_heads, T, T))
    bd_s = jnp.take_along_axis(bd, idx, axis=-1)

    score = (ac + bd_s) / jnp.sqrt(jnp.float32(hd))
    padm = jnp.logical_not(mask[:, :, 0])
    score = jnp.where(padm[:, None, None, :], jnp.float32(-1e9), score)
    attn = jax.nn.softmax(score, axis=-1)
    ctx = jnp.einsum("bhij,bjhd->bihd", attn, vh).reshape(B, T, D)
    out = ctx @ params["w_out"] + params["b_out"]
    return inputs + out


# --------------------------------- param setup ---------------------------------- #
def build_pe(d_model, max_length):
    position = jnp.arange(-max_length, max_length + 1, dtype=jnp.float32)[:, None]
    w_ang = 1.0 / jnp.power(10000.0, jnp.arange(0, d_model, 2, dtype=jnp.float32) / d_model)
    pe = jnp.zeros((2 * max_length + 1, d_model), jnp.float32)
    pe = pe.at[:, 0::2].set(jnp.sin(position * w_ang[None, :]))
    pe = pe.at[:, 1::2].set(jnp.cos(position * w_ang[None, :]))
    return pe


if __name__ == "__main__":
    # D is a multiple of 128 so output stores are lane-dense.
    B, T, D, H = 2, 8, 128, 4

    key = jax.random.PRNGKey(0)
    ks = jax.random.split(key, 10)
    init = lambda k, shape: 0.1 * jax.random.normal(k, shape, jnp.float32)

    params = {
        # Scaling params are nominally ones/zeros at init; perturb so the path is exercised.
        "scale": 1.0 + 0.1 * jax.random.normal(ks[8], (1, D), jnp.float32),
        "shift": 0.1 * jax.random.normal(ks[9], (1, D), jnp.float32),
        "w_in": init(ks[0], (D, 3 * D)),              # in_proj_weight^T
        "b_in": init(ks[1], (1, 3 * D)),              # in_proj_bias
        "w_pos": init(ks[2], (D, D)),                 # linear_pos weight^T (no bias)
        "bias_u": init(ks[3], (1, D)),                # pos_bias_u, flattened (H*hd,)
        "bias_v": init(ks[4], (1, D)),                # pos_bias_v, flattened (H*hd,)
        "w_out": init(ks[5], (D, D)),                 # out_proj weight^T
        "b_out": init(ks[6], (1, D)),                 # out_proj bias
        "pe": build_pe(D, 2048),
    }

    inputs = jax.random.normal(ks[7], (B, T, D), jnp.float32)
    # mask: (B, T, 1) bool, True = valid; pad the last two frames of batch 1
    mask = jnp.ones((B, T, 1), dtype=bool).at[1, T - 2:, 0].set(False)

    ref = mhsa_reference(inputs, mask, params, num_heads=H)

    # Exact-dtype check (f32 MXU operands): tight tolerance validates the math.
    out_f32 = jax.block_until_ready(
        mhsa_module_forward(inputs, mask, params, num_heads=H, mm_dtype=jnp.float32))
    np.testing.assert_allclose(np.asarray(out_f32), np.asarray(ref), rtol=5e-3, atol=5e-3)

    # Performance configuration (bf16 MXU operands, f32 accumulation): looser tolerance.
    out_bf16 = jax.block_until_ready(
        mhsa_module_forward(inputs, mask, params, num_heads=H))
    np.testing.assert_allclose(np.asarray(out_bf16), np.asarray(ref), rtol=5e-2, atol=5e-2)

    print("KERNEL_OK")
</pallas_src>

<mosaic_0001>
module attributes {stable_mosaic.version = 11 : i64} {
  func.func @_mhsa_kernel(%arg0: i32, %arg1: memref<2x8x128xf32, #tpu.memory_space<vmem>>, %arg2: memref<2x1x8xf32, #tpu.memory_space<vmem>>, %arg3: memref<128x384xf32, #tpu.memory_space<vmem>>, %arg4: memref<1x384xf32, #tpu.memory_space<vmem>>, %arg5: memref<4x15x32xf32, #tpu.memory_space<vmem>>, %arg6: memref<4x1x32xf32, #tpu.memory_space<vmem>>, %arg7: memref<4x1x32xf32, #tpu.memory_space<vmem>>, %arg8: memref<128x128xf32, #tpu.memory_space<vmem>>, %arg9: memref<1x128xf32, #tpu.memory_space<vmem>>, %arg10: memref<2x8x128xf32, #tpu.memory_space<vmem>>) attributes {dimension_semantics = [#tpu.dimension_semantics<parallel>], iteration_bounds = array<i64: 1>, scalar_prefetch = 0 : i64, scratch_operands = 0 : i64, tpu.core_type = #tpu.core_type<tc>, window_params = [{transform_indices = @transform_0, window_bounds = array<i64: 2, 8, 128>}, {transform_indices = @transform_1, window_bounds = array<i64: 2, 1, 8>}, {pipeline_mode = #tpu.pipeline_mode<synchronous>, transform_indices = @transform_2, window_bounds = array<i64: 128, 384>}, {pipeline_mode = #tpu.pipeline_mode<synchronous>, transform_indices = @transform_3, window_bounds = array<i64: 1, 384>}, {pipeline_mode = #tpu.pipeline_mode<synchronous>, transform_indices = @transform_4, window_bounds = array<i64: 4, 15, 32>}, {pipeline_mode = #tpu.pipeline_mode<synchronous>, transform_indices = @transform_5, window_bounds = array<i64: 4, 1, 32>}, {pipeline_mode = #tpu.pipeline_mode<synchronous>, transform_indices = @transform_6, window_bounds = array<i64: 4, 1, 32>}, {pipeline_mode = #tpu.pipeline_mode<synchronous>, transform_indices = @transform_7, window_bounds = array<i64: 128, 128>}, {pipeline_mode = #tpu.pipeline_mode<synchronous>, transform_indices = @transform_8, window_bounds = array<i64: 1, 128>}, {transform_indices = @transform_9, window_bounds = array<i64: 2, 8, 128>}]} {
    %c0 = arith.constant 0 : index
    %c0_0 = arith.constant 0 : index
    %c0_1 = arith.constant 0 : index
    %0 = vector.load %arg1[%c0, %c0_0, %c0_1] : memref<2x8x128xf32, #tpu.memory_space<vmem>>, vector<2x8x128xf32>
    %1 = vector.shape_cast %0 : vector<2x8x128xf32> to vector<16x128xf32>
    %c0_2 = arith.constant 0 : index
    %c0_3 = arith.constant 0 : index
    %2 = vector.load %arg3[%c0_2, %c0_3] : memref<128x384xf32, #tpu.memory_space<vmem>>, vector<128x384xf32>
    %cst = arith.constant dense<0.000000e+00> : vector<16x384xf32>
    %3 = tpu.matmul %1, %2, %cst {dimension_numbers = #tpu.dot_dimension_numbers<[1], [0], [0], [1], [0, 0, 1, 1], [], []>} : vector<16x128xf32>, vector<128x384xf32>, vector<16x384xf32> -> vector<16x384xf32>
    %c0_4 = arith.constant 0 : index
    %c0_5 = arith.constant 0 : index
    %4 = vector.load %arg4[%c0_4, %c0_5] : memref<1x384xf32, #tpu.memory_space<vmem>>, vector<1x384xf32>
    %5 = vector.broadcast %4 : vector<1x384xf32> to vector<16x384xf32>
    %6 = arith.addf %3, %5 : vector<16x384xf32>
    %7 = vector.extract_strided_slice %6 {offsets = [0, 0], sizes = [16, 32], strides = [1, 1]} : vector<16x384xf32> to vector<16x32xf32>
    %8 = vector.extract_strided_slice %6 {offsets = [0, 32], sizes = [16, 32], strides = [1, 1]} : vector<16x384xf32> to vector<16x32xf32>
    %9 = vector.extract_strided_slice %6 {offsets = [0, 64], sizes = [16, 32], strides = [1, 1]} : vector<16x384xf32> to vector<16x32xf32>
    %10 = vector.extract_strided_slice %6 {offsets = [0, 96], sizes = [16, 32], strides = [1, 1]} : vector<16x384xf32> to vector<16x32xf32>
    %11 = vector.shape_cast %7 : vector<16x32xf32> to vector<1x16x32xf32>
    %12 = vector.shape_cast %8 : vector<16x32xf32> to vector<1x16x32xf32>
    %13 = vector.shape_cast %9 : vector<16x32xf32> to vector<1x16x32xf32>
    %14 = vector.shape_cast %10 : vector<16x32xf32> to vector<1x16x32xf32>
    %15 = tpu.concatenate %11, %12, %13, %14 in 0 : vector<1x16x32xf32>, vector<1x16x32xf32>, vector<1x16x32xf32>, vector<1x16x32xf32> -> vector<4x16x32xf32>
    %16 = vector.extract_strided_slice %6 {offsets = [0, 128], sizes = [16, 32], strides = [1, 1]} : vector<16x384xf32> to vector<16x32xf32>
    %17 = vector.extract_strided_slice %6 {offsets = [0, 160], sizes = [16, 32], strides = [1, 1]} : vector<16x384xf32> to vector<16x32xf32>
    %18 = vector.extract_strided_slice %6 {offsets = [0, 192], sizes = [16, 32], strides = [1, 1]} : vector<16x384xf32> to vector<16x32xf32>
    %19 = vector.extract_strided_slice %6 {offsets = [0, 224], sizes = [16, 32], strides = [1, 1]} : vector<16x384xf32> to vector<16x32xf32>
    %20 = vector.shape_cast %16 : vector<16x32xf32> to vector<1x16x32xf32>
    %21 = vector.shape_cast %17 : vector<16x32xf32> to vector<1x16x32xf32>
    %22 = vector.shape_cast %18 : vector<16x32xf32> to vector<1x16x32xf32>
    %23 = vector.shape_cast %19 : vector<16x32xf32> to vector<1x16x32xf32>
    %24 = tpu.concatenate %20, %21, %22, %23 in 0 : vector<1x16x32xf32>, vector<1x16x32xf32>, vector<1x16x32xf32>, vector<1x16x32xf32> -> vector<4x16x32xf32>
    %25 = vector.extract_strided_slice %6 {offsets = [0, 256], sizes = [16, 32], strides = [1, 1]} : vector<16x384xf32> to vector<16x32xf32>
    %26 = vector.extract_strided_slice %6 {offsets = [0, 288], sizes = [16, 32], strides = [1, 1]} : vector<16x384xf32> to vector<16x32xf32>
    %27 = vector.extract_strided_slice %6 {offsets = [0, 320], sizes = [16, 32], strides = [1, 1]} : vector<16x384xf32> to vector<16x32xf32>
    %28 = vector.extract_strided_slice %6 {offsets = [0, 352], sizes = [16, 32], strides = [1, 1]} : vector<16x384xf32> to vector<16x32xf32>
    %29 = vector.shape_cast %25 : vector<16x32xf32> to vector<1x16x32xf32>
    %30 = vector.shape_cast %26 : vector<16x32xf32> to vector<1x16x32xf32>
    %31 = vector.shape_cast %27 : vector<16x32xf32> to vector<1x16x32xf32>
    %32 = vector.shape_cast %28 : vector<16x32xf32> to vector<1x16x32xf32>
    %33 = tpu.concatenate %29, %30, %31, %32 in 0 : vector<1x16x32xf32>, vector<1x16x32xf32>, vector<1x16x32xf32>, vector<1x16x32xf32> -> vector<4x16x32xf32>
    %c0_6 = arith.constant 0 : index
    %c0_7 = arith.constant 0 : index
    %c0_8 = arith.constant 0 : index
    %34 = vector.load %arg5[%c0_6, %c0_7, %c0_8] : memref<4x15x32xf32, #tpu.memory_space<vmem>>, vector<4x15x32xf32>
    %c0_9 = arith.constant 0 : index
    %c0_10 = arith.constant 0 : index
    %c0_11 = arith.constant 0 : index
    %35 = vector.load %arg6[%c0_9, %c0_10, %c0_11] : memref<4x1x32xf32, #tpu.memory_space<vmem>>, vector<4x1x32xf32>
    %36 = vector.broadcast %35 : vector<4x1x32xf32> to vector<4x16x32xf32>
    %37 = arith.addf %15, %36 : vector<4x16x32xf32>
    %c0_12 = arith.constant 0 : index
    %c0_13 = arith.constant 0 : index
    %c0_14 = arith.constant 0 : index
    %38 = vector.load %arg7[%c0_12, %c0_13, %c0_14] : memref<4x1x32xf32, #tpu.memory_space<vmem>>, vector<4x1x32xf32>
    %39 = vector.broadcast %38 : vector<4x1x32xf32> to vector<4x16x32xf32>
    %40 = arith.addf %15, %39 : vector<4x16x32xf32>
    %41 = vector.shape_cast %37 : vector<4x16x32xf32> to vector<8x8x32xf32>
    %42 = vector.shape_cast %24 : vector<4x16x32xf32> to vector<8x8x32xf32>
    "tpu.trace_start"() <{level = 10 : i32, message = "nid,njd->nij"}> : () -> ()
    %cst_15 = arith.constant dense<0.000000e+00> : vector<8x8x8xf32>
    %43 = tpu.matmul %41, %42, %cst_15 {dimension_numbers = #tpu.dot_dimension_numbers<[2], [2], [1], [1], [0, 0, 0, 1, 1, 1], [0], [0]>} : vector<8x8x32xf32>, vector<8x8x32xf32>, vector<8x8x8xf32> -> vector<8x8x8xf32>
    "tpu.trace_stop"() : () -> ()
    "tpu.trace_start"() <{level = 10 : i32, message = "hid,hrd->hir"}> : () -> ()
    %cst_16 = arith.constant dense<0.000000e+00> : vector<4x16x15xf32>
    %44 = tpu.matmul %40, %34, %cst_16 {dimension_numbers = #tpu.dot_dimension_numbers<[2], [2], [1], [1], [0, 0, 0, 1, 1, 1], [0], [0]>} : vector<4x16x32xf32>, vector<4x15x32xf32>, vector<4x16x15xf32> -> vector<4x16x15xf32>
    "tpu.trace_stop"() : () -> ()
    %45 = vector.shape_cast %44 : vector<4x16x15xf32> to vector<8x8x15xf32>
    %cst_17 = arith.constant 0.000000e+00 : f32
    %46 = vector.broadcast %cst_17 : f32 to vector<8x8x1xf32>
    %47 = tpu.concatenate %46, %45 in 2 : vector<8x8x1xf32>, vector<8x8x15xf32> -> vector<8x8x16xf32>
    %48 = vector.shape_cast %47 : vector<8x8x16xf32> to vector<8x16x8xf32>
    %49 = vector.extract_strided_slice %48 {offsets = [0, 1, 0], sizes = [8, 15, 8], strides = [1, 1, 1]} : vector<8x16x8xf32> to vector<8x15x8xf32>
    %50 = vector.shape_cast %49 : vector<8x15x8xf32> to vector<8x8x15xf32>
    %51 = vector.extract_strided_slice %50 {offsets = [0, 0, 0], sizes = [8, 8, 8], strides = [1, 1, 1]} : vector<8x8x15xf32> to vector<8x8x8xf32>
    %c0_18 = arith.constant 0 : index
    %c0_19 = arith.constant 0 : index
    %c0_20 = arith.constant 0 : index
    %52 = vector.load %arg2[%c0_18, %c0_19, %c0_20] : memref<2x1x8xf32, #tpu.memory_space<vmem>>, vector<2x1x8xf32>
    %53 = vector.shape_cast %52 : vector<2x1x8xf32> to vector<1x2x1x8xf32>
    %54 = vector.shape_cast %53 : vector<1x2x1x8xf32> to vector<1x2x1x8xf32>
    %55 = vector.broadcast %54 : vector<1x2x1x8xf32> to vector<4x2x1x8xf32>
    %56 = vector.shape_cast %55 : vector<4x2x1x8xf32> to vector<8x1x8xf32>
    %57 = arith.addf %43, %51 : vector<8x8x8xf32>
    %58 = vector.broadcast %56 : vector<8x1x8xf32> to vector<8x8x8xf32>
    %59 = arith.addf %57, %58 : vector<8x8x8xf32>
    %cst_21 = arith.constant dense<0xFF800000> : vector<8x8xf32>
    %60 = vector.multi_reduction <maximumf>, %59, %cst_21 [2] : vector<8x8x8xf32> to vector<8x8xf32>
    %61 = vector.shape_cast %60 : vector<8x8xf32> to vector<8x8x1xf32>
    %62 = vector.broadcast %61 : vector<8x8x1xf32> to vector<8x8x8xf32>
    %63 = arith.subf %59, %62 : vector<8x8x8xf32>
    %64 = math.exp %63 : vector<8x8x8xf32>
    %cst_22 = arith.constant dense<0.000000e+00> : vector<8x8xf32>
    %65 = vector.multi_reduction <add>, %64, %cst_22 [2] : vector<8x8x8xf32> to vector<8x8xf32>
    %66 = vector.shape_cast %65 : vector<8x8xf32> to vector<8x8x1xf32>
    %67 = tpu.reciprocal %66 {approx = true} : vector<8x8x1xf32> -> vector<8x8x1xf32>
    %68 = vector.broadcast %67 : vector<8x8x1xf32> to vector<8x8x8xf32>
    %69 = arith.mulf %64, %68 : vector<8x8x8xf32>
    %70 = vector.shape_cast %33 : vector<4x16x32xf32> to vector<8x8x32xf32>
    "tpu.trace_start"() <{level = 10 : i32, message = "nij,njd->nid"}> : () -> ()
    %cst_23 = arith.constant dense<0.000000e+00> : vector<8x8x32xf32>
    %71 = tpu.matmul %69, %70, %cst_23 {dimension_numbers = #tpu.dot_dimension_numbers<[2], [1], [1], [2], [0, 0, 0, 1, 1, 2], [0], [0]>} : vector<8x8x8xf32>, vector<8x8x32xf32>, vector<8x8x32xf32> -> vector<8x8x32xf32>
    "tpu.trace_stop"() : () -> ()
    %72 = vector.shape_cast %71 : vector<8x8x32xf32> to vector<4x16x32xf32>
    %73 = vector.extract_strided_slice %72 {offsets = [0, 0, 0], sizes = [1, 16, 32], strides = [1, 1, 1]} : vector<4x16x32xf32> to vector<1x16x32xf32>
    %74 = vector.shape_cast %73 : vector<1x16x32xf32> to vector<16x32xf32>
    %75 = vector.extract_strided_slice %72 {offsets = [1, 0, 0], sizes = [1, 16, 32], strides = [1, 1, 1]} : vector<4x16x32xf32> to vector<1x16x32xf32>
    %76 = vector.shape_cast %75 : vector<1x16x32xf32> to vector<16x32xf32>
    %77 = vector.extract_strided_slice %72 {offsets = [2, 0, 0], sizes = [1, 16, 32], strides = [1, 1, 1]} : vector<4x16x32xf32> to vector<1x16x32xf32>
    %78 = vector.shape_cast %77 : vector<1x16x32xf32> to vector<16x32xf32>
    %79 = vector.extract_strided_slice %72 {offsets = [3, 0, 0], sizes = [1, 16, 32], strides = [1, 1, 1]} : vector<4x16x32xf32> to vector<1x16x32xf32>
    %80 = vector.shape_cast %79 : vector<1x16x32xf32> to vector<16x32xf32>
    %81 = tpu.concatenate %74, %76, %78, %80 in 1 : vector<16x32xf32>, vector<16x32xf32>, vector<16x32xf32>, vector<16x32xf32> -> vector<16x128xf32>
    %c0_24 = arith.constant 0 : index
    %c0_25 = arith.constant 0 : index
    %82 = vector.load %arg8[%c0_24, %c0_25] : memref<128x128xf32, #tpu.memory_space<vmem>>, vector<128x128xf32>
    %cst_26 = arith.constant dense<0.000000e+00> : vector<16x128xf32>
    %83 = tpu.matmul %81, %82, %cst_26 {dimension_numbers = #tpu.dot_dimension_numbers<[1], [0], [0], [1], [0, 0, 1, 1], [], []>} : vector<16x128xf32>, vector<128x128xf32>, vector<16x128xf32> -> vector<16x128xf32>
    %c0_27 = arith.constant 0 : index
    %c0_28 = arith.constant 0 : index
    %84 = vector.load %arg9[%c0_27, %c0_28] : memref<1x128xf32, #tpu.memory_space<vmem>>, vector<1x128xf32>
    %85 = vector.broadcast %84 : vector<1x128xf32> to vector<16x128xf32>
    %86 = arith.addf %83, %85 : vector<16x128xf32>
    %87 = vector.shape_cast %86 : vector<16x128xf32> to vector<2x8x128xf32>
    %88 = arith.addf %0, %87 : vector<2x8x128xf32>
    %c0_29 = arith.constant 0 : index
    %c0_30 = arith.constant 0 : index
    %c0_31 = arith.constant 0 : index
    %89 = vector.load %arg10[%c0_29, %c0_30, %c0_31] : memref<2x8x128xf32, #tpu.memory_space<vmem>>, vector<2x8x128xf32>
    tpu.vector_store %arg10[%c0_29, %c0_30, %c0_31], %88 {strides = array<i32>} : memref<2x8x128xf32, #tpu.memory_space<vmem>>, vector<2x8x128xf32>,
    return
  }
  func.func @transform_0(%arg0: i32) -> (i32, i32, i32) {
    %c0_i32 = arith.constant 0 : i32
    %c0_i32_0 = arith.constant 0 : i32
    %c0_i32_1 = arith.constant 0 : i32
    return %arg0, %c0_i32, %c0_i32_0 : i32, i32, i32
  }
  func.func @transform_1(%arg0: i32) -> (i32, i32, i32) {
    %c0_i32 = arith.constant 0 : i32
    %c0_i32_0 = arith.constant 0 : i32
    %c0_i32_1 = arith.constant 0 : i32
    return %arg0, %c0_i32, %c0_i32_0 : i32, i32, i32
  }
  func.func @transform_2(%arg0: i32) -> (i32, i32) {
    %c0_i32 = arith.constant 0 : i32
    %c0_i32_0 = arith.constant 0 : i32
    %c0_i32_1 = arith.constant 0 : i32
    return %c0_i32, %c0_i32_0 : i32, i32
  }
  func.func @transform_3(%arg0: i32) -> (i32, i32) {
    %c0_i32 = arith.constant 0 : i32
    %c0_i32_0 = arith.constant 0 : i32
    %c0_i32_1 = arith.constant 0 : i32
    return %c0_i32, %c0_i32_0 : i32, i32
  }
  func.func @transform_4(%arg0: i32) -> (i32, i32, i32) {
    %c0_i32 = arith.constant 0 : i32
    %c0_i32_0 = arith.constant 0 : i32
    %c0_i32_1 = arith.constant 0 : i32
    %c0_i32_2 = arith.constant 0 : i32
    return %c0_i32, %c0_i32_0, %c0_i32_1 : i32, i32, i32
  }
  func.func @transform_5(%arg0: i32) -> (i32, i32, i32) {
    %c0_i32 = arith.constant 0 : i32
    %c0_i32_0 = arith.constant 0 : i32
    %c0_i32_1 = arith.constant 0 : i32
    %c0_i32_2 = arith.constant 0 : i32
    return %c0_i32, %c0_i32_0, %c0_i32_1 : i32, i32, i32
  }
  func.func @transform_6(%arg0: i32) -> (i32, i32, i32) {
    %c0_i32 = arith.constant 0 : i32
    %c0_i32_0 = arith.constant 0 : i32
    %c0_i32_1 = arith.constant 0 : i32
    %c0_i32_2 = arith.constant 0 : i32
    return %c0_i32, %c0_i32_0, %c0_i32_1 : i32, i32, i32
  }
  func.func @transform_7(%arg0: i32) -> (i32, i32) {
    %c0_i32 = arith.constant 0 : i32
    %c0_i32_0 = arith.constant 0 : i32
    %c0_i32_1 = arith.constant 0 : i32
    return %c0_i32, %c0_i32_0 : i32, i32
  }
  func.func @transform_8(%arg0: i32) -> (i32, i32) {
    %c0_i32 = arith.constant 0 : i32
    %c0_i32_0 = arith.constant 0 : i32
    %c0_i32_1 = arith.constant 0 : i32
    return %c0_i32, %c0_i32_0 : i32, i32
  }
  func.func @transform_9(%arg0: i32) -> (i32, i32, i32) {
    %c0_i32 = arith.constant 0 : i32
    %c0_i32_0 = arith.constant 0 : i32
    %c0_i32_1 = arith.constant 0 : i32
    return %arg0, %c0_i32, %c0_i32_0 : i32, i32, i32
  }
}

module attributes {stable_mosaic.version = 11 : i64} {
  func.func @_mhsa_kernel(%arg0: i32, %arg1: memref<2x8x128xf32, #tpu.memory_space<vmem>>, %arg2: memref<2x1x8xf32, #tpu.memory_space<vmem>>, %arg3: memref<128x384xf32, #tpu.memory_space<vmem>>, %arg4: memref<1x384xf32, #tpu.memory_space<vmem>>, %arg5: memref<4x15x32xf32, #tpu.memory_space<vmem>>, %arg6: memref<4x1x32xf32, #tpu.memory_space<vmem>>, %arg7: memref<4x1x32xf32, #tpu.memory_space<vmem>>, %arg8: memref<128x128xf32, #tpu.memory_space<vmem>>, %arg9: memref<1x128xf32, #tpu.memory_space<vmem>>, %arg10: memref<2x8x128xf32, #tpu.memory_space<vmem>>) attributes {dimension_semantics = [#tpu.dimension_semantics<parallel>], iteration_bounds = array<i64: 1>, scalar_prefetch = 0 : i64, scratch_operands = 0 : i64, tpu.core_type = #tpu.core_type<tc>, window_params = [{transform_indices = @transform_0, window_bounds = array<i64: 2, 8, 128>}, {transform_indices = @transform_1, window_bounds = array<i64: 2, 1, 8>}, {pipeline_mode = #tpu.pipeline_mode<synchronous>, transform_indices = @transform_2, window_bounds = array<i64: 128, 384>}, {pipeline_mode = #tpu.pipeline_mode<synchronous>, transform_indices = @transform_3, window_bounds = array<i64: 1, 384>}, {pipeline_mode = #tpu.pipeline_mode<synchronous>, transform_indices = @transform_4, window_bounds = array<i64: 4, 15, 32>}, {pipeline_mode = #tpu.pipeline_mode<synchronous>, transform_indices = @transform_5, window_bounds = array<i64: 4, 1, 32>}, {pipeline_mode = #tpu.pipeline_mode<synchronous>, transform_indices = @transform_6, window_bounds = array<i64: 4, 1, 32>}, {pipeline_mode = #tpu.pipeline_mode<synchronous>, transform_indices = @transform_7, window_bounds = array<i64: 128, 128>}, {pipeline_mode = #tpu.pipeline_mode<synchronous>, transform_indices = @transform_8, window_bounds = array<i64: 1, 128>}, {transform_indices = @transform_9, window_bounds = array<i64: 2, 8, 128>}]} {
    %c0 = arith.constant 0 : index
    %c0_0 = arith.constant 0 : index
    %c0_1 = arith.constant 0 : index
    %0 = vector.load %arg1[%c0, %c0_0, %c0_1] : memref<2x8x128xf32, #tpu.memory_space<vmem>>, vector<2x8x128xf32>
    %1 = vector.shape_cast %0 : vector<2x8x128xf32> to vector<16x128xf32>
    %c0_2 = arith.constant 0 : index
    %c0_3 = arith.constant 0 : index
    %2 = vector.load %arg3[%c0_2, %c0_3] : memref<128x384xf32, #tpu.memory_space<vmem>>, vector<128x384xf32>
    %cst = arith.constant dense<0.000000e+00> : vector<16x384xf32>
    %3 = tpu.matmul %1, %2, %cst {dimension_numbers = #tpu.dot_dimension_numbers<[1], [0], [0], [1], [0, 0, 1, 1], [], []>} : vector<16x128xf32>, vector<128x384xf32>, vector<16x384xf32> -> vector<16x384xf32>
    %c0_4 = arith.constant 0 : index
    %c0_5 = arith.constant 0 : index
    %4 = vector.load %arg4[%c0_4, %c0_5] : memref<1x384xf32, #tpu.memory_space<vmem>>, vector<1x384xf32>
    %5 = vector.broadcast %4 : vector<1x384xf32> to vector<16x384xf32>
    %6 = arith.addf %3, %5 : vector<16x384xf32>
    %7 = vector.extract_strided_slice %6 {offsets = [0, 0], sizes = [16, 32], strides = [1, 1]} : vector<16x384xf32> to vector<16x32xf32>
    %8 = vector.extract_strided_slice %6 {offsets = [0, 32], sizes = [16, 32], strides = [1, 1]} : vector<16x384xf32> to vector<16x32xf32>
    %9 = vector.extract_strided_slice %6 {offsets = [0, 64], sizes = [16, 32], strides = [1, 1]} : vector<16x384xf32> to vector<16x32xf32>
    %10 = vector.extract_strided_slice %6 {offsets = [0, 96], sizes = [16, 32], strides = [1, 1]} : vector<16x384xf32> to vector<16x32xf32>
    %11 = vector.shape_cast %7 : vector<16x32xf32> to vector<1x16x32xf32>
    %12 = vector.shape_cast %8 : vector<16x32xf32> to vector<1x16x32xf32>
    %13 = vector.shape_cast %9 : vector<16x32xf32> to vector<1x16x32xf32>
    %14 = vector.shape_cast %10 : vector<16x32xf32> to vector<1x16x32xf32>
    %15 = tpu.concatenate %11, %12, %13, %14 in 0 : vector<1x16x32xf32>, vector<1x16x32xf32>, vector<1x16x32xf32>, vector<1x16x32xf32> -> vector<4x16x32xf32>
    %16 = vector.extract_strided_slice %6 {offsets = [0, 128], sizes = [16, 32], strides = [1, 1]} : vector<16x384xf32> to vector<16x32xf32>
    %17 = vector.extract_strided_slice %6 {offsets = [0, 160], sizes = [16, 32], strides = [1, 1]} : vector<16x384xf32> to vector<16x32xf32>
    %18 = vector.extract_strided_slice %6 {offsets = [0, 192], sizes = [16, 32], strides = [1, 1]} : vector<16x384xf32> to vector<16x32xf32>
    %19 = vector.extract_strided_slice %6 {offsets = [0, 224], sizes = [16, 32], strides = [1, 1]} : vector<16x384xf32> to vector<16x32xf32>
    %20 = vector.shape_cast %16 : vector<16x32xf32> to vector<1x16x32xf32>
    %21 = vector.shape_cast %17 : vector<16x32xf32> to vector<1x16x32xf32>
    %22 = vector.shape_cast %18 : vector<16x32xf32> to vector<1x16x32xf32>
    %23 = vector.shape_cast %19 : vector<16x32xf32> to vector<1x16x32xf32>
    %24 = tpu.concatenate %20, %21, %22, %23 in 0 : vector<1x16x32xf32>, vector<1x16x32xf32>, vector<1x16x32xf32>, vector<1x16x32xf32> -> vector<4x16x32xf32>
    %25 = vector.extract_strided_slice %6 {offsets = [0, 256], sizes = [16, 32], strides = [1, 1]} : vector<16x384xf32> to vector<16x32xf32>
    %26 = vector.extract_strided_slice %6 {offsets = [0, 288], sizes = [16, 32], strides = [1, 1]} : vector<16x384xf32> to vector<16x32xf32>
    %27 = vector.extract_strided_slice %6 {offsets = [0, 320], sizes = [16, 32], strides = [1, 1]} : vector<16x384xf32> to vector<16x32xf32>
    %28 = vector.extract_strided_slice %6 {offsets = [0, 352], sizes = [16, 32], strides = [1, 1]} : vector<16x384xf32> to vector<16x32xf32>
    %29 = vector.shape_cast %25 : vector<16x32xf32> to vector<1x16x32xf32>
    %30 = vector.shape_cast %26 : vector<16x32xf32> to vector<1x16x32xf32>
    %31 = vector.shape_cast %27 : vector<16x32xf32> to vector<1x16x32xf32>
    %32 = vector.shape_cast %28 : vector<16x32xf32> to vector<1x16x32xf32>
    %33 = tpu.concatenate %29, %30, %31, %32 in 0 : vector<1x16x32xf32>, vector<1x16x32xf32>, vector<1x16x32xf32>, vector<1x16x32xf32> -> vector<4x16x32xf32>
    %c0_6 = arith.constant 0 : index
    %c0_7 = arith.constant 0 : index
    %c0_8 = arith.constant 0 : index
    %34 = vector.load %arg5[%c0_6, %c0_7, %c0_8] : memref<4x15x32xf32, #tpu.memory_space<vmem>>, vector<4x15x32xf32>
    %c0_9 = arith.constant 0 : index
    %c0_10 = arith.constant 0 : index
    %c0_11 = arith.constant 0 : index
    %35 = vector.load %arg6[%c0_9, %c0_10, %c0_11] : memref<4x1x32xf32, #tpu.memory_space<vmem>>, vector<4x1x32xf32>
    %36 = vector.broadcast %35 : vector<4x1x32xf32> to vector<4x16x32xf32>
    %37 = arith.addf %15, %36 : vector<4x16x32xf32>
    %c0_12 = arith.constant 0 : index
    %c0_13 = arith.constant 0 : index
    %c0_14 = arith.constant 0 : index
    %38 = vector.load %arg7[%c0_12, %c0_13, %c0_14] : memref<4x1x32xf32, #tpu.memory_space<vmem>>, vector<4x1x32xf32>
    %39 = vector.broadcast %38 : vector<4x1x32xf32> to vector<4x16x32xf32>
    %40 = arith.addf %15, %39 : vector<4x16x32xf32>
    %41 = vector.shape_cast %37 : vector<4x16x32xf32> to vector<8x8x32xf32>
    %42 = vector.shape_cast %24 : vector<4x16x32xf32> to vector<8x8x32xf32>
    "tpu.trace_start"() <{level = 10 : i32, message = "nid,njd->nij"}> : () -> ()
    %cst_15 = arith.constant dense<0.000000e+00> : vector<8x8x8xf32>
    %43 = tpu.matmul %41, %42, %cst_15 {dimension_numbers = #tpu.dot_dimension_numbers<[2], [2], [1], [1], [0, 0, 0, 1, 1, 1], [0], [0]>} : vector<8x8x32xf32>, vector<8x8x32xf32>, vector<8x8x8xf32> -> vector<8x8x8xf32>
    "tpu.trace_stop"() : () -> ()
    "tpu.trace_start"() <{level = 10 : i32, message = "hid,hrd->hir"}> : () -> ()
    %cst_16 = arith.constant dense<0.000000e+00> : vector<4x16x15xf32>
    %44 = tpu.matmul %40, %34, %cst_16 {dimension_numbers = #tpu.dot_dimension_numbers<[2], [2], [1], [1], [0, 0, 0, 1, 1, 1], [0], [0]>} : vector<4x16x32xf32>, vector<4x15x32xf32>, vector<4x16x15xf32> -> vector<4x16x15xf32>
    "tpu.trace_stop"() : () -> ()
    %45 = vector.shape_cast %44 : vector<4x16x15xf32> to vector<8x8x15xf32>
    %46 = vector.extract_strided_slice %45 {offsets = [0, 0, 7], sizes = [8, 1, 8], strides = [1, 1, 1]} : vector<8x8x15xf32> to vector<8x1x8xf32>
    %47 = vector.extract_strided_slice %45 {offsets = [0, 1, 6], sizes = [8, 1, 8], strides = [1, 1, 1]} : vector<8x8x15xf32> to vector<8x1x8xf32>
    %48 = vector.extract_strided_slice %45 {offsets = [0, 2, 5], sizes = [8, 1, 8], strides = [1, 1, 1]} : vector<8x8x15xf32> to vector<8x1x8xf32>
    %49 = vector.extract_strided_slice %45 {offsets = [0, 3, 4], sizes = [8, 1, 8], strides = [1, 1, 1]} : vector<8x8x15xf32> to vector<8x1x8xf32>
    %50 = vector.extract_strided_slice %45 {offsets = [0, 4, 3], sizes = [8, 1, 8], strides = [1, 1, 1]} : vector<8x8x15xf32> to vector<8x1x8xf32>
    %51 = vector.extract_strided_slice %45 {offsets = [0, 5, 2], sizes = [8, 1, 8], strides = [1, 1, 1]} : vector<8x8x15xf32> to vector<8x1x8xf32>
    %52 = vector.extract_strided_slice %45 {offsets = [0, 6, 1], sizes = [8, 1, 8], strides = [1, 1, 1]} : vector<8x8x15xf32> to vector<8x1x8xf32>
    %53 = vector.extract_strided_slice %45 {offsets = [0, 7, 0], sizes = [8, 1, 8], strides = [1, 1, 1]} : vector<8x8x15xf32> to vector<8x1x8xf32>
    %54 = tpu.concatenate %46, %47, %48, %49, %50, %51, %52, %53 in 1 : vector<8x1x8xf32>, vector<8x1x8xf32>, vector<8x1x8xf32>, vector<8x1x8xf32>, vector<8x1x8xf32>, vector<8x1x8xf32>, vector<8x1x8xf32>, vector<8x1x8xf32> -> vector<8x8x8xf32>
    %c0_17 = arith.constant 0 : index
    %c0_18 = arith.constant 0 : index
    %c0_19 = arith.constant 0 : index
    %55 = vector.load %arg2[%c0_17, %c0_18, %c0_19] : memref<2x1x8xf32, #tpu.memory_space<vmem>>, vector<2x1x8xf32>
    %56 = vector.shape_cast %55 : vector<2x1x8xf32> to vector<1x2x1x8xf32>
    %57 = vector.shape_cast %56 : vector<1x2x1x8xf32> to vector<1x2x1x8xf32>
    %58 = vector.broadcast %57 : vector<1x2x1x8xf32> to vector<4x2x1x8xf32>
    %59 = vector.shape_cast %58 : vector<4x2x1x8xf32> to vector<8x1x8xf32>
    %60 = arith.addf %43, %54 : vector<8x8x8xf32>
    %61 = vector.broadcast %59 : vector<8x1x8xf32> to vector<8x8x8xf32>
    %62 = arith.addf %60, %61 : vector<8x8x8xf32>
    %cst_20 = arith.constant dense<0xFF800000> : vector<8x8xf32>
    %63 = vector.multi_reduction <maximumf>, %62, %cst_20 [2] : vector<8x8x8xf32> to vector<8x8xf32>
    %64 = vector.shape_cast %63 : vector<8x8xf32> to vector<8x8x1xf32>
    %65 = vector.broadcast %64 : vector<8x8x1xf32> to vector<8x8x8xf32>
    %66 = arith.subf %62, %65 : vector<8x8x8xf32>
    %67 = math.exp %66 : vector<8x8x8xf32>
    %cst_21 = arith.constant dense<0.000000e+00> : vector<8x8xf32>
    %68 = vector.multi_reduction <add>, %67, %cst_21 [2] : vector<8x8x8xf32> to vector<8x8xf32>
    %69 = vector.shape_cast %68 : vector<8x8xf32> to vector<8x8x1xf32>
    %70 = tpu.reciprocal %69 {approx = true} : vector<8x8x1xf32> -> vector<8x8x1xf32>
    %71 = vector.broadcast %70 : vector<8x8x1xf32> to vector<8x8x8xf32>
    %72 = arith.mulf %67, %71 : vector<8x8x8xf32>
    %73 = vector.shape_cast %33 : vector<4x16x32xf32> to vector<8x8x32xf32>
    "tpu.trace_start"() <{level = 10 : i32, message = "nij,njd->nid"}> : () -> ()
    %cst_22 = arith.constant dense<0.000000e+00> : vector<8x8x32xf32>
    %74 = tpu.matmul %72, %73, %cst_22 {dimension_numbers = #tpu.dot_dimension_numbers<[2], [1], [1], [2], [0, 0, 0, 1, 1, 2], [0], [0]>} : vector<8x8x8xf32>, vector<8x8x32xf32>, vector<8x8x32xf32> -> vector<8x8x32xf32>
    "tpu.trace_stop"() : () -> ()
    %75 = vector.shape_cast %74 : vector<8x8x32xf32> to vector<4x16x32xf32>
    %76 = vector.extract_strided_slice %75 {offsets = [0, 0, 0], sizes = [1, 16, 32], strides = [1, 1, 1]} : vector<4x16x32xf32> to vector<1x16x32xf32>
    %77 = vector.shape_cast %76 : vector<1x16x32xf32> to vector<16x32xf32>
    %78 = vector.extract_strided_slice %75 {offsets = [1, 0, 0], sizes = [1, 16, 32], strides = [1, 1, 1]} : vector<4x16x32xf32> to vector<1x16x32xf32>
    %79 = vector.shape_cast %78 : vector<1x16x32xf32> to vector<16x32xf32>
    %80 = vector.extract_strided_slice %75 {offsets = [2, 0, 0], sizes = [1, 16, 32], strides = [1, 1, 1]} : vector<4x16x32xf32> to vector<1x16x32xf32>
    %81 = vector.shape_cast %80 : vector<1x16x32xf32> to vector<16x32xf32>
    %82 = vector.extract_strided_slice %75 {offsets = [3, 0, 0], sizes = [1, 16, 32], strides = [1, 1, 1]} : vector<4x16x32xf32> to vector<1x16x32xf32>
    %83 = vector.shape_cast %82 : vector<1x16x32xf32> to vector<16x32xf32>
    %84 = tpu.concatenate %77, %79, %81, %83 in 1 : vector<16x32xf32>, vector<16x32xf32>, vector<16x32xf32>, vector<16x32xf32> -> vector<16x128xf32>
    %c0_23 = arith.constant 0 : index
    %c0_24 = arith.constant 0 : index
    %85 = vector.load %arg8[%c0_23, %c0_24] : memref<128x128xf32, #tpu.memory_space<vmem>>, vector<128x128xf32>
    %cst_25 = arith.constant dense<0.000000e+00> : vector<16x128xf32>
    %86 = tpu.matmul %84, %85, %cst_25 {dimension_numbers = #tpu.dot_dimension_numbers<[1], [0], [0], [1], [0, 0, 1, 1], [], []>} : vector<16x128xf32>, vector<128x128xf32>, vector<16x128xf32> -> vector<16x128xf32>
    %c0_26 = arith.constant 0 : index
    %c0_27 = arith.constant 0 : index
    %87 = vector.load %arg9[%c0_26, %c0_27] : memref<1x128xf32, #tpu.memory_space<vmem>>, vector<1x128xf32>
    %88 = vector.broadcast %87 : vector<1x128xf32> to vector<16x128xf32>
    %89 = arith.addf %86, %88 : vector<16x128xf32>
    %90 = vector.shape_cast %89 : vector<16x128xf32> to vector<2x8x128xf32>
    %91 = arith.addf %0, %90 : vector<2x8x128xf32>
    %c0_28 = arith.constant 0 : index
    %c0_29 = arith.constant 0 : index
    %c0_30 = arith.constant 0 : index
    %92 = vector.load %arg10[%c0_28, %c0_29, %c0_30] : memref<2x8x128xf32, #tpu.memory_space<vmem>>, vector<2x8x128xf32>
    tpu.vector_store %arg10[%c0_28, %c0_29, %c0_30], %91 {strides = array<i32>} : memref<2x8x128xf32, #tpu.memory_space<vmem>>, vector<2x8x128xf32>,
    return
  }
  func.func @transform_0(%arg0: i32) -> (i32, i32, i32) {
    %c0_i32 = arith.constant 0 : i32
    %c0_i32_0 = arith.constant 0 : i32
    %c0_i32_1 = arith.constant 0 : i32
    return %arg0, %c0_i32, %c0_i32_0 : i32, i32, i32
  }
  func.func @transform_1(%arg0: i32) -> (i32, i32, i32) {
    %c0_i32 = arith.constant 0 : i32
    %c0_i32_0 = arith.constant 0 : i32
    %c0_i32_1 = arith.constant 0 : i32
    return %arg0, %c0_i32, %c0_i32_0 : i32, i32, i32
  }
  func.func @transform_2(%arg0: i32) -> (i32, i32) {
    %c0_i32 = arith.constant 0 : i32
    %c0_i32_0 = arith.constant 0 : i32
    %c0_i32_1 = arith.constant 0 : i32
    return %c0_i32, %c0_i32_0 : i32, i32
  }
  func.func @transform_3(%arg0: i32) -> (i32, i32) {
    %c0_i32 = arith.constant 0 : i32
    %c0_i32_0 = arith.constant 0 : i32
    %c0_i32_1 = arith.constant 0 : i32
    return %c0_i32, %c0_i32_0 : i32, i32
  }
  func.func @transform_4(%arg0: i32) -> (i32, i32, i32) {
    %c0_i32 = arith.constant 0 : i32
    %c0_i32_0 = arith.constant 0 : i32
    %c0_i32_1 = arith.constant 0 : i32
    %c0_i32_2 = arith.constant 0 : i32
    return %c0_i32, %c0_i32_0, %c0_i32_1 : i32, i32, i32
  }
  func.func @transform_5(%arg0: i32) -> (i32, i32, i32) {
    %c0_i32 = arith.constant 0 : i32
    %c0_i32_0 = arith.constant 0 : i32
    %c0_i32_1 = arith.constant 0 : i32
    %c0_i32_2 = arith.constant 0 : i32
    return %c0_i32, %c0_i32_0, %c0_i32_1 : i32, i32, i32
  }
  func.func @transform_6(%arg0: i32) -> (i32, i32, i32) {
    %c0_i32 = arith.constant 0 : i32
    %c0_i32_0 = arith.constant 0 : i32
    %c0_i32_1 = arith.constant 0 : i32
    %c0_i32_2 = arith.constant 0 : i32
    return %c0_i32, %c0_i32_0, %c0_i32_1 : i32, i32, i32
  }
  func.func @transform_7(%arg0: i32) -> (i32, i32) {
    %c0_i32 = arith.constant 0 : i32
    %c0_i32_0 = arith.constant 0 : i32
    %c0_i32_1 = arith.constant 0 : i32
    return %c0_i32, %c0_i32_0 : i32, i32
  }
  func.func @transform_8(%arg0: i32) -> (i32, i32) {
    %c0_i32 = arith.constant 0 : i32
    %c0_i32_0 = arith.constant 0 : i32
    %c0_i32_1 = arith.constant 0 : i32
    return %c0_i32, %c0_i32_0 : i32, i32
  }
  func.func @transform_9(%arg0: i32) -> (i32, i32, i32) {
    %c0_i32 = arith.constant 0 : i32
    %c0_i32_0 = arith.constant 0 : i32
    %c0_i32_1 = arith.constant 0 : i32
    return %arg0, %c0_i32, %c0_i32_0 : i32, i32, i32
  }
}

</mosaic_0001>

<llo_original>
// kernel: tpu_custom_call.1
$region0: #{tpu_custom_call.1}
  #allocation0 [shape = 'u32[]', space=smem, size = 0x4, offset = 0x4, fixed_abs, tag = 'smem constant byte address 0x4 - core index']
  #allocation1 [shape = 'u32[144,128]{1,0:T(1,128)}', space=vmem, size = 0x12000, scoped, tag = 'internal scratch']
  %s0 = inlined_call_operand.vmem [shape: f32[2,8,128], index: 0, kind: input, shape index: {}]
  %s1 = inlined_call_operand.vmem [shape: f32[2,1,8], index: 1, kind: input, shape index: {}]
  %s2 = inlined_call_operand.hbm [shape: f32[128,384], index: 2, kind: input, shape index: {}]
  %s3 = inlined_call_operand.hbm [shape: f32[1,384], index: 3, kind: input, shape index: {}]
  %s4 = inlined_call_operand.vmem [shape: f32[4,15,32], index: 4, kind: input, shape index: {}]
  %s5 = inlined_call_operand.vmem [shape: f32[4,1,32], index: 5, kind: input, shape index: {}]
  %s6 = inlined_call_operand.hbm [shape: f32[4,1,32], index: 6, kind: input, shape index: {}]
  %s7 = inlined_call_operand.vmem [shape: f32[128,128], index: 7, kind: input, shape index: {}]
  %s8 = inlined_call_operand.vmem [shape: f32[1,128], index: 8, kind: input, shape index: {}]
  %s9 = inlined_call_operand.hbm [shape: f32[2,8,128], index: 9, kind: output, shape index: {}]
  %s10 = sld [smem:[#allocation0]]
  $region58: #{tpu_custom_call.1} parent=0
    _
  %s12 = ssub.s32 1, %s10
  %s13 = scalar_select 0, %s12, %s10
  $region1: #{tpu_custom_call.1} parent=0
    #allocation2 [shape = 'u8[196608]{0}', space=vmem, size = 0x30000, scoped, tag = 'input window, operand 2, single buffered']
    #allocation3 [shape = 's32[1]{0}', space=sflag, size = 0x4, scoped, tag = 'scoped memory for tpu_custom_call.1']
    #allocation4 [shape = 's32[1]{0}', space=sflag, size = 0x4, scoped, tag = 'scoped memory for tpu_custom_call.1']
    #allocation5 [shape = 'u8[1536]{0}', space=vmem, size = 0x800, scoped, tag = 'input window, operand 3, single buffered']
    #allocation6 [shape = 's32[1]{0}', space=sflag, size = 0x4, scoped, tag = 'scoped memory for tpu_custom_call.1']
    #allocation7 [shape = 'u8[2048]{0}', space=vmem, size = 0x800, scoped, tag = 'input window, operand 6, single buffered']
    #allocation8 [shape = 'u8[8192]{0}', space=vmem, size = 0x2000, scoped, tag = 'output window, operand 0, single buffered']
    %14 = vsyncpa [#allocation3], 0
    %15 = vsyncpa [#allocation6], 0
    %16 = vsyncpa [#allocation4], 0
    // Predicated region
    $region2: #{tpu_custom_call.1} parent=1 // pred_check
      _
    $region3: #{tpu_custom_call.1} parent=1 // pred_check_branch
      %18 = sbr.rel (0) target = $region5
    $region4: #{tpu_custom_call.1} parent=1 // pred_region
      _
    $region5: #{tpu_custom_call.1} parent=1 // pred_fallthru
      _
    // Predicated region
    $region6: #{tpu_custom_call.1} parent=1 // pred_check
      _
    $region7: #{tpu_custom_call.1} parent=1 // pred_check_branch
      %20 = sbr.rel (0) target = $region9
    $region8: #{tpu_custom_call.1} parent=1 // pred_region
      _
    $region9: #{tpu_custom_call.1} parent=1 // pred_fallthru
      _
    // Predicated region
    $region10: #{tpu_custom_call.1} parent=1 // pred_check
      _
    $region11: #{tpu_custom_call.1} parent=1 // pred_check_branch
      %22 = sbr.rel (0) target = $region13
    $region12: #{tpu_custom_call.1} parent=1 // pred_region
      %s24 = ssub.s32 6144, 6144
      %25 = vsyncadd [#allocation3], %s24
      %s26 = sshll.u32 [#allocation2], 4
      %s27 = int_to_ptr.vmem [resolvable:$true] %s26
      %32 = dma.hbm_to_vmem [thread:$0]  %s2, 6144, %s27, [#allocation3], 384, 384, 24
    $region13: #{tpu_custom_call.1} parent=1 // pred_fallthru
      _
    // Predicated region
    $region14: #{tpu_custom_call.1} parent=1 // pred_check
      _
    $region15: #{tpu_custom_call.1} parent=1 // pred_check_branch
      %34 = sbr.rel (0) target = $region17
    $region16: #{tpu_custom_call.1} parent=1 // pred_region
      %s36 = ssub.s32 48, 48
      %37 = vsyncadd [#allocation6], %s36
      %s39 = sshll.u32 [#allocation5], 4
      %s40 = int_to_ptr.vmem [resolvable:$true] %s39
      %42 = dma.hbm_to_vmem [thread:$0]  %s3, 48, %s40, [#allocation6]
    $region17: #{tpu_custom_call.1} parent=1 // pred_fallthru
      _
    // Predicated region
    $region18: #{tpu_custom_call.1} parent=1 // pred_check
      _
    $region19: #{tpu_custom_call.1} parent=1 // pred_check_branch
      %44 = sbr.rel (0) target = $region21
    $region20: #{tpu_custom_call.1} parent=1 // pred_region
      _
    $region21: #{tpu_custom_call.1} parent=1 // pred_fallthru
      _
    // Predicated region
    $region22: #{tpu_custom_call.1} parent=1 // pred_check
      _
    $region23: #{tpu_custom_call.1} parent=1 // pred_check_branch
      %46 = sbr.rel (0) target = $region25
    $region24: #{tpu_custom_call.1} parent=1 // pred_region
      _
    $region25: #{tpu_custom_call.1} parent=1 // pred_fallthru
      _
    // Predicated region
    $region26: #{tpu_custom_call.1} parent=1 // pred_check
      _
    $region27: #{tpu_custom_call.1} parent=1 // pred_check_branch
      %48 = sbr.rel (0) target = $region29
    $region28: #{tpu_custom_call.1} parent=1 // pred_region
      %s50 = ssub.s32 64, 64
      %51 = vsyncadd [#allocation6], %s50
      %s52 = sshll.u32 [#allocation7], 4
      %s53 = int_to_ptr.vmem [resolvable:$true] %s52
      %58 = dma.hbm_to_vmem [thread:$0]  %s6, 64, %s53, [#allocation6], 16, 16, 1
    $region29: #{tpu_custom_call.1} parent=1 // pred_fallthru
      _
    // Predicated region
    $region30: #{tpu_custom_call.1} parent=1 // pred_check
      _
    $region31: #{tpu_custom_call.1} parent=1 // pred_check_branch
      %60 = sbr.rel (0) target = $region33
    $region32: #{tpu_custom_call.1} parent=1 // pred_region
      _
    $region33: #{tpu_custom_call.1} parent=1 // pred_fallthru
      _
    // Predicated region
    $region34: #{tpu_custom_call.1} parent=1 // pred_check
      _
    $region35: #{tpu_custom_call.1} parent=1 // pred_check_branch
      %62 = sbr.rel (0) target = $region37
    $region36: #{tpu_custom_call.1} parent=1 // pred_region
      _
    $region37: #{tpu_custom_call.1} parent=1 // pred_fallthru
      _
    // Predicated region
    $region38: #{tpu_custom_call.1} parent=1 // pred_check
      _
    $region39: #{tpu_custom_call.1} parent=1 // pred_check_branch
      %64 = sbr.rel (0) target = $region41
    $region40: #{tpu_custom_call.1} parent=1 // pred_region
      %65 = dma.done [#allocation3], 6144
    $region41: #{tpu_custom_call.1} parent=1 // pred_fallthru
      _
    // Predicated region
    $region42: #{tpu_custom_call.1} parent=1 // pred_check
      _
    $region43: #{tpu_custom_call.1} parent=1 // pred_check_branch
      %67 = sbr.rel (0) target = $region45
    $region44: #{tpu_custom_call.1} parent=1 // pred_region
      %68 = dma.done [#allocation6], 48
    $region45: #{tpu_custom_call.1} parent=1 // pred_fallthru
      _
    // Predicated region
    $region46: #{tpu_custom_call.1} parent=1 // pred_check
      _
    $region47: #{tpu_custom_call.1} parent=1 // pred_check_branch
      %70 = sbr.rel (0) target = $region49
    $region48: #{tpu_custom_call.1} parent=1 // pred_region
      %71 = dma.done [#allocation6], 64
    $region49: #{tpu_custom_call.1} parent=1 // pred_fallthru
      _
    %v72 = vld [vmem:[%s0] sm:$0xff]
    %v73 = vld [vmem:[%s0 + $0x8] sm:$0xff]
    %v74 = vld [vmem:[#allocation2] sm:$0xff]
    %v75 = vld [vmem:[#allocation2 + $0x8] sm:$0xff]
    %v76 = vld [vmem:[#allocation2 + $0x10] sm:$0xff]
    %v77 = vld [vmem:[#allocation2 + $0x18] sm:$0xff]
    %v78 = vld [vmem:[#allocation2 + $0x20] sm:$0xff]
    %v79 = vld [vmem:[#allocation2 + $0x28] sm:$0xff]
    %v80 = vld [vmem:[#allocation2 + $0x30] sm:$0xff]
    %v81 = vld [vmem:[#allocation2 + $0x38] sm:$0xff]
    %v82 = vld [vmem:[#allocation2 + $0x40] sm:$0xff]
    %v83 = vld [vmem:[#allocation2 + $0x48] sm:$0xff]
    %v84 = vld [vmem:[#allocation2 + $0x50] sm:$0xff]
    %v85 = vld [vmem:[#allocation2 + $0x58] sm:$0xff]
    %v86 = vld [vmem:[#allocation2 + $0x60] sm:$0xff]
    %v87 = vld [vmem:[#allocation2 + $0x68] sm:$0xff]
    %v88 = vld [vmem:[#allocation2 + $0x70] sm:$0xff]
    %v89 = vld [vmem:[#allocation2 + $0x78] sm:$0xff]
    %v90 = vld [vmem:[#allocation2 + $0x80] sm:$0xff]
    %v91 = vld [vmem:[#allocation2 + $0x88] sm:$0xff]
    %v92 = vld [vmem:[#allocation2 + $0x90] sm:$0xff]
    %v93 = vld [vmem:[#allocation2 + $0x98] sm:$0xff]
    %v94 = vld [vmem:[#allocation2 + $0xa0] sm:$0xff]
    %v95 = vld [vmem:[#allocation2 + $0xa8] sm:$0xff]
    %v96 = vld [vmem:[#allocation2 + $0xb0] sm:$0xff]
    %v97 = vld [vmem:[#allocation2 + $0xb8] sm:$0xff]
    %v98 = vld [vmem:[#allocation2 + $0xc0] sm:$0xff]
    %v99 = vld [vmem:[#allocation2 + $0xc8] sm:$0xff]
    %v100 = vld [vmem:[#allocation2 + $0xd0] sm:$0xff]
    %v101 = vld [vmem:[#allocation2 + $0xd8] sm:$0xff]
    %v102 = vld [vmem:[#allocation2 + $0xe0] sm:$0xff]
    %v103 = vld [vmem:[#allocation2 + $0xe8] sm:$0xff]
    %v104 = vld [vmem:[#allocation2 + $0xf0] sm:$0xff]
    %v105 = vld [vmem:[#allocation2 + $0xf8] sm:$0xff]
    %v106 = vld [vmem:[#allocation2 + $0x100] sm:$0xff]
    %v107 = vld [vmem:[#allocation2 + $0x108] sm:$0xff]
    %v108 = vld [vmem:[#allocation2 + $0x110] sm:$0xff]
    %v109 = vld [vmem:[#allocation2 + $0x118] sm:$0xff]
    %v110 = vld [vmem:[#allocation2 + $0x120] sm:$0xff]
    %v111 = vld [vmem:[#allocation2 + $0x128] sm:$0xff]
    %v112 = vld [vmem:[#allocation2 + $0x130] sm:$0xff]
    %v113 = vld [vmem:[#allocation2 + $0x138] sm:$0xff]
    %v114 = vld [vmem:[#allocation2 + $0x140] sm:$0xff]
    %v115 = vld [vmem:[#allocation2 + $0x148] sm:$0xff]
    %v116 = vld [vmem:[#allocation2 + $0x150] sm:$0xff]
    %v117 = vld [vmem:[#allocation2 + $0x158] sm:$0xff]
    %v118 = vld [vmem:[#allocation2 + $0x160] sm:$0xff]
    %v119 = vld [vmem:[#allocation2 + $0x168] sm:$0xff]
    %v120 = vld [vmem:[#allocation2 + $0x170] sm:$0xff]
    %v121 = vld [vmem:[#allocation2 + $0x178] sm:$0xff]
    %v122 = vld [vmem:[#allocation5] sm:$0x7]
    %v124 = vlaneseq
    %v125 = vshrl.u32 %v124, 7
    %v126 = vsub.s32 0, %v125
    %v127 = vrot.slane %v122, %v126
    %v128 = vlaneseq
    %v129 = vshrl.u32 %v128, 7
    %v130 = vsub.s32 1, %v129
    %v131 = vrot.slane %v122, %v130
    %v132 = vlaneseq
    %v133 = vshrl.u32 %v132, 7
    %v134 = vsub.s32 2, %v133
    %v135 = vrot.slane %v122, %v134
    %139 = vmatprep.subr.mxu0 %v75
    %140 = vmatpush1.msra.mxu0 %v74
    %141 = vmatprep.subr.mxu0 %v78
    %142 = vmatpush1.msra.mxu0 %v77
    %143 = vmatprep.subr.mxu0 %v81
    %144 = vmatpush1.msra.mxu0 %v80
    %145 = vmatprep.subr.mxu0 %v84
    %146 = vmatpush1.msra.mxu0 %v83
    %147 = vmatprep.subr.mxu0 %v87
    %148 = vmatpush1.msra.mxu0 %v86
    %149 = vmatprep.subr.mxu0 %v90
    %150 = vmatpush1.msra.mxu0 %v89
    %151 = vmatprep.subr.mxu0 %v93
    %152 = vmatpush1.msra.mxu0 %v92
    %153 = vmatprep.subr.mxu0 %v96
    %154 = vmatpush1.msra.mxu0 %v95
    %155 = vmatprep.subr.mxu0 %v99
    %156 = vmatpush1.msra.mxu0 %v98
    %157 = vmatprep.subr.mxu0 %v102
    %158 = vmatpush1.msra.mxu0 %v101
    %159 = vmatprep.subr.mxu0 %v105
    %160 = vmatpush1.msra.mxu0 %v104
    %161 = vmatprep.subr.mxu0 %v108
    %162 = vmatpush1.msra.mxu0 %v107
    %163 = vmatprep.subr.mxu0 %v111
    %164 = vmatpush1.msra.mxu0 %v110
    %165 = vmatprep.subr.mxu0 %v114
    %166 = vmatpush1.msra.mxu0 %v113
    %167 = vmatprep.subr.mxu0 %v117
    %168 = vmatpush1.msra.mxu0 %v116
    %169 = vmatprep.subr.mxu0 %v120
    %170 = vmatpush1.msra.mxu0 %v119
    %171 = vmatprep.subr.mxu0 0.0
    %172 = vmatpush1.msra.mxu0 0.0
    %173 = vmatprep.subr.mxu0 0.0
    %174 = vmatpush1.msra.mxu0 0.0
    %175 = vmatprep.subr.mxu0 0.0
    %176 = vmatpush1.msra.mxu0 0.0
    %177 = vmatprep.subr.mxu0 0.0
    %178 = vmatpush1.msra.mxu0 0.0
    %179 = vmatprep.subr.mxu0 0.0
    %180 = vmatpush1.msra.mxu0 0.0
    %181 = vmatprep.subr.mxu0 0.0
    %182 = vmatpush1.msra.mxu0 0.0
    %183 = vmatprep.subr.mxu0 0.0
    %184 = vmatpush1.msra.mxu0 0.0
    %185 = vmatprep.subr.mxu0 0.0
    %186 = vmatpush1.msra.mxu0 0.0
    %187 = vmatprep.subr.mxu0 0.0
    %188 = vmatpush1.msra.mxu0 0.0
    %189 = vmatprep.subr.mxu0 0.0
    %190 = vmatpush1.msra.mxu0 0.0
    %191 = vmatprep.subr.mxu0 0.0
    %192 = vmatpush1.msra.mxu0 0.0
    %193 = vmatprep.subr.mxu0 0.0
    %194 = vmatpush1.msra.mxu0 0.0
    %195 = vmatprep.subr.mxu0 0.0
    %196 = vmatpush1.msra.mxu0 0.0
    %197 = vmatprep.subr.mxu0 0.0
    %198 = vmatpush1.msra.mxu0 0.0
    %199 = vmatprep.subr.mxu0 0.0
    %200 = vmatpush1.msra.mxu0 0.0
    %201 = vmatprep.subr.mxu0 0.0
    %202 = vmatpush1.msra.mxu0 0.0
    %203 = vmatprep.mubr.f32.mxu0 0.0
    %204 = vmatmul.mubr.f32.gmra.mrb[0].mxu0 %v72
    %v205 = vpop.f32.mrb[0].mxu0
    %v206 = vadd.f32 %v127, %v205
    %v207 = vpop.f32.mrb[0].mxu0
    %v208 = vadd.f32 %v131, %v207
    %209 = vmatprep.mubr.f32.mxu0 0.0
    %210 = vmatmul.mubr.f32.gmra.mrb[0].mxu0 %v73
    %v211 = vpop.f32.mrb[0].mxu0
    %v212 = vadd.f32 %v127, %v211
    %v213 = vpop.f32.mrb[0].mxu0
    %v214 = vadd.f32 %v131, %v213
    %215 = vdwg.mxu0
    %216 = vmatprep.subr.mxu0 0.0
    %217 = vmatpush1.msra.mxu0 %v76
    %218 = vmatprep.subr.mxu0 0.0
    %219 = vmatpush1.msra.mxu0 %v79
    %220 = vmatprep.subr.mxu0 0.0
    %221 = vmatpush1.msra.mxu0 %v82
    %222 = vmatprep.subr.mxu0 0.0
    %223 = vmatpush1.msra.mxu0 %v85
    %224 = vmatprep.subr.mxu0 0.0
    %225 = vmatpush1.msra.mxu0 %v88
    %226 = vmatprep.subr.mxu0 0.0
    %227 = vmatpush1.msra.mxu0 %v91
    %228 = vmatprep.subr.mxu0 0.0
    %229 = vmatpush1.msra.mxu0 %v94
    %230 = vmatprep.subr.mxu0 0.0
    %231 = vmatpush1.msra.mxu0 %v97
    %232 = vmatprep.subr.mxu0 0.0
    %233 = vmatpush1.msra.mxu0 %v100
    %234 = vmatprep.subr.mxu0 0.0
    %235 = vmatpush1.msra.mxu0 %v103
    %236 = vmatprep.subr.mxu0 0.0
    %237 = vmatpush1.msra.mxu0 %v106
    %238 = vmatprep.subr.mxu0 0.0
    %239 = vmatpush1.msra.mxu0 %v109
    %240 = vmatprep.subr.mxu0 0.0
    %241 = vmatpush1.msra.mxu0 %v112
    %242 = vmatprep.subr.mxu0 0.0
    %243 = vmatpush1.msra.mxu0 %v115
    %244 = vmatprep.subr.mxu0 0.0
    %245 = vmatpush1.msra.mxu0 %v118
    %246 = vmatprep.subr.mxu0 0.0
    %247 = vmatpush1.msra.mxu0 %v121
    %248 = vmatprep.subr.mxu0 0.0
    %249 = vmatpush1.msra.mxu0 0.0
    %250 = vmatprep.subr.mxu0 0.0
    %251 = vmatpush1.msra.mxu0 0.0
    %252 = vmatprep.subr.mxu0 0.0
    %253 = vmatpush1.msra.mxu0 0.0
    %254 = vmatprep.subr.mxu0 0.0
    %255 = vmatpush1.msra.mxu0 0.0
    %256 = vmatprep.subr.mxu0 0.0
    %257 = vmatpush1.msra.mxu0 0.0
    %258 = vmatprep.subr.mxu0 0.0
    %259 = vmatpush1.msra.mxu0 0.0
    %260 = vmatprep.subr.mxu0 0.0
    %261 = vmatpush1.msra.mxu0 0.0
    %262 = vmatprep.subr.mxu0 0.0
    %263 = vmatpush1.msra.mxu0 0.0
    %264 = vmatprep.subr.mxu0 0.0
    %265 = vmatpush1.msra.mxu0 0.0
    %266 = vmatprep.subr.mxu0 0.0
    %267 = vmatpush1.msra.mxu0 0.0
    %268 = vmatprep.subr.mxu0 0.0
    %269 = vmatpush1.msra.mxu0 0.0
    %270 = vmatprep.subr.mxu0 0.0
    %271 = vmatpush1.msra.mxu0 0.0
    %272 = vmatprep.subr.mxu0 0.0
    %273 = vmatpush1.msra.mxu0 0.0
    %274 = vmatprep.subr.mxu0 0.0
    %275 = vmatpush1.msra.mxu0 0.0
    %276 = vmatprep.subr.mxu0 0.0
    %277 = vmatpush1.msra.mxu0 0.0
    %278 = vmatprep.subr.mxu0 0.0
    %279 = vmatpush1.msra.mxu0 0.0
    %280 = vmatprep.mubr.f32.mxu0 0.0
    %281 = vmatmul.mubr.f32.gmra.mrb[0].mxu0 %v72
    %v282 = vpop.f32.mrb[0].mxu0
    %v283 = vadd.f32 %v135, %v282
    %v284 = vpop.f32.mrb[0].mxu0
    %285 = vmatprep.mubr.f32.mxu0 0.0
    %286 = vmatmul.mubr.f32.gmra.mrb[0].mxu0 %v73
    %v287 = vpop.f32.mrb[0].mxu0
    %v288 = vadd.f32 %v135, %v287
    %v289 = vpop.f32.mrb[0].mxu0
    %290 = vdwg.mxu0
    %293 = vrot.lane.b32.xlu0 %v206, 96
    %v294 = vpop.permute.xlu0 %293
    %295 = vrot.lane.b32.xlu0 %v212, 96
    %v296 = vpop.permute.xlu0 %295
    %299 = vrot.lane.b32.xlu0 %v206, 64
    %v300 = vpop.permute.xlu0 %299
    %301 = vrot.lane.b32.xlu0 %v212, 64
    %v302 = vpop.permute.xlu0 %301
    %305 = vrot.lane.b32.xlu0 %v206, 32
    %v306 = vpop.permute.xlu0 %305
    %307 = vrot.lane.b32.xlu0 %v212, 32
    %v308 = vpop.permute.xlu0 %307
    %313 = vrot.lane.b32.xlu0 %v208, 96
    %v314 = vpop.permute.xlu0 %313
    %315 = vrot.lane.b32.xlu0 %v214, 96
    %v316 = vpop.permute.xlu0 %315
    %317 = vrot.lane.b32.xlu0 %v208, 64
    %v318 = vpop.permute.xlu0 %317
    %319 = vrot.lane.b32.xlu0 %v214, 64
    %v320 = vpop.permute.xlu0 %319
    %321 = vrot.lane.b32.xlu0 %v208, 32
    %v322 = vpop.permute.xlu0 %321
    %323 = vrot.lane.b32.xlu0 %v214, 32
    %v324 = vpop.permute.xlu0 %323
    %327 = vrot.lane.b32.xlu0 %v283, 96
    %v328 = vpop.permute.xlu0 %327
    %329 = vrot.lane.b32.xlu0 %v288, 96
    %v330 = vpop.permute.xlu0 %329
    %333 = vrot.lane.b32.xlu0 %v283, 64
    %v334 = vpop.permute.xlu0 %333
    %335 = vrot.lane.b32.xlu0 %v288, 64
    %v336 = vpop.permute.xlu0 %335
    %339 = vrot.lane.b32.xlu0 %v283, 32
    %v340 = vpop.permute.xlu0 %339
    %341 = vrot.lane.b32.xlu0 %v288, 32
    %v342 = vpop.permute.xlu0 %341
    %v345 = vld [vmem:[%s4] sm:$0xff]
    %v346 = vld [vmem:[%s4 + $0x8] sm:$0x7f]
    %v347 = vld [vmem:[%s4 + $0x10] sm:$0xff]
    %v348 = vld [vmem:[%s4 + $0x18] sm:$0x7f]
    %v349 = vld [vmem:[%s4 + $0x20] sm:$0xff]
    %v350 = vld [vmem:[%s4 + $0x28] sm:$0x7f]
    %v351 = vld [vmem:[%s4 + $0x30] sm:$0xff]
    %v352 = vld [vmem:[%s4 + $0x38] sm:$0x7f]
    %v353 = vld [vmem:[%s5] sm:$0x1]
    %v354 = vld [vmem:[%s5 + $0x1] sm:$0x1]
    %v355 = vld [vmem:[%s5 + $0x2] sm:$0x1]
    %v356 = vld [vmem:[%s5 + $0x3] sm:$0x1]
    %v361 = vlaneseq
    %v362 = vshrl.u32 %v361, 7
    %v363 = vsub.s32 0, %v362
    %v364 = vrot.slane %v353, %v363
    %v365 = vlaneseq
    %v366 = vshrl.u32 %v365, 7
    %v367 = vsub.s32 0, %v366
    %v368 = vrot.slane %v354, %v367
    %v369 = vlaneseq
    %v370 = vshrl.u32 %v369, 7
    %v371 = vsub.s32 0, %v370
    %v372 = vrot.slane %v355, %v371
    %v373 = vlaneseq
    %v374 = vshrl.u32 %v373, 7
    %v375 = vsub.s32 0, %v374
    %v376 = vrot.slane %v356, %v375
    %v381 = vadd.f32 %v206, %v364
    %v382 = vadd.f32 %v212, %v364
    %v383 = vadd.f32 %v294, %v368
    %v384 = vadd.f32 %v296, %v368
    %v385 = vadd.f32 %v300, %v372
    %v386 = vadd.f32 %v302, %v372
    %v387 = vadd.f32 %v306, %v376
    %v388 = vadd.f32 %v308, %v376
    %v389 = vld [vmem:[#allocation7] sm:$0x1]
    %v390 = vld [vmem:[#allocation7 + $0x1] sm:$0x1]
    %v391 = vld [vmem:[#allocation7 + $0x2] sm:$0x1]
    %v392 = vld [vmem:[#allocation7 + $0x3] sm:$0x1]
    %v397 = vlaneseq
    %v398 = vshrl.u32 %v397, 7
    %v399 = vsub.s32 0, %v398
    %v400 = vrot.slane %v389, %v399
    %v401 = vlaneseq
    %v402 = vshrl.u32 %v401, 7
    %v403 = vsub.s32 0, %v402
    %v404 = vrot.slane %v390, %v403
    %v405 = vlaneseq
    %v406 = vshrl.u32 %v405, 7
    %v407 = vsub.s32 0, %v406
    %v408 = vrot.slane %v391, %v407
    %v409 = vlaneseq
    %v410 = vshrl.u32 %v409, 7
    %v411 = vsub.s32 0, %v410
    %v412 = vrot.slane %v392, %v411
    %v417 = vadd.f32 %v206, %v400
    %v418 = vadd.f32 %v212, %v400
    %v419 = vadd.f32 %v294, %v404
    %v420 = vadd.f32 %v296, %v404
    %v421 = vadd.f32 %v300, %v408
    %v422 = vadd.f32 %v302, %v408
    %v423 = vadd.f32 %v306, %v412
    %v424 = vadd.f32 %v308, %v412
    %vm425 = vcmask 261120
    %v427 = vsel %vm425, %v417, 0
    %v430 = vsel %vm425, %v418, 0
    %v433 = vsel %vm425, %v345, 0
    %v436 = vsel %vm425, %v346, 0
    %438 = vmatprep.subr.mxu0 0.0
    %439 = vmatpush1.xpose.msra.mxu0 %v433
    %440 = vmatprep.subr.mxu0 0.0
    %441 = vmatpush1.xpose.msra.mxu0 %v436
    %442 = vmatprep.subr.mxu0 0.0
    %443 = vmatpush1.xpose.msra.mxu0 0.0
    %444 = vmatprep.subr.mxu0 0.0
    %445 = vmatpush1.xpose.msra.mxu0 0.0
    %446 = vmatprep.subr.mxu0 0.0
    %447 = vmatpush1.xpose.msra.mxu0 0.0
    %448 = vmatprep.subr.mxu0 0.0
    %449 = vmatpush1.xpose.msra.mxu0 0.0
    %450 = vmatprep.subr.mxu0 0.0
    %451 = vmatpush1.xpose.msra.mxu0 0.0
    %452 = vmatprep.subr.mxu0 0.0
    %453 = vmatpush1.xpose.msra.mxu0 0.0
    %454 = vmatprep.subr.mxu0 0.0
    %455 = vmatpush1.xpose.msra.mxu0 0.0
    %456 = vmatprep.subr.mxu0 0.0
    %457 = vmatpush1.xpose.msra.mxu0 0.0
    %458 = vmatprep.subr.mxu0 0.0
    %459 = vmatpush1.xpose.msra.mxu0 0.0
    %460 = vmatprep.subr.mxu0 0.0
    %461 = vmatpush1.xpose.msra.mxu0 0.0
    %462 = vmatprep.subr.mxu0 0.0
    %463 = vmatpush1.xpose.msra.mxu0 0.0
    %464 = vmatprep.subr.mxu0 0.0
    %465 = vmatpush1.xpose.msra.mxu0 0.0
    %466 = vmatprep.subr.mxu0 0.0
    %467 = vmatpush1.xpose.msra.mxu0 0.0
    %468 = vmatprep.subr.mxu0 0.0
    %469 = vmatpush1.xpose.msra.mxu0 0.0
    %470 = vmatprep.subr.mxu0 0.0
    %471 = vmatpush1.xpose.msra.mxu0 0.0
    %472 = vmatprep.subr.mxu0 0.0
    %473 = vmatpush1.xpose.msra.mxu0 0.0
    %474 = vmatprep.subr.mxu0 0.0
    %475 = vmatpush1.xpose.msra.mxu0 0.0
    %476 = vmatprep.subr.mxu0 0.0
    %477 = vmatpush1.xpose.msra.mxu0 0.0
    %478 = vmatprep.subr.mxu0 0.0
    %479 = vmatpush1.xpose.msra.mxu0 0.0
    %480 = vmatprep.subr.mxu0 0.0
    %481 = vmatpush1.xpose.msra.mxu0 0.0
    %482 = vmatprep.subr.mxu0 0.0
    %483 = vmatpush1.xpose.msra.mxu0 0.0
    %484 = vmatprep.subr.mxu0 0.0
    %485 = vmatpush1.xpose.msra.mxu0 0.0
    %486 = vmatprep.subr.mxu0 0.0
    %487 = vmatpush1.xpose.msra.mxu0 0.0
    %488 = vmatprep.subr.mxu0 0.0
    %489 = vmatpush1.xpose.msra.mxu0 0.0
    %490 = vmatprep.subr.mxu0 0.0
    %491 = vmatpush1.xpose.msra.mxu0 0.0
    %492 = vmatprep.subr.mxu0 0.0
    %493 = vmatpush1.xpose.msra.mxu0 0.0
    %494 = vmatprep.subr.mxu0 0.0
    %495 = vmatpush1.xpose.msra.mxu0 0.0
    %496 = vmatprep.subr.mxu0 0.0
    %497 = vmatpush1.xpose.msra.mxu0 0.0
    %498 = vmatprep.subr.mxu0 0.0
    %499 = vmatpush1.xpose.msra.mxu0 0.0
    %500 = vmatprep.subr.mxu0 0.0
    %501 = vmatpush1.xpose.msra.mxu0 0.0
    %502 = vmatprep.mubr.f32.mxu0 0.0
    %503 = vmatmul.mubr.f32.gmra.mrb[0].mxu0 %v427
    %v504 = vpop.f32.mrb[0].mxu0
    %v505 = vadd.f32 0.0, %v504
    %v506 = vpop.f32.mrb[0].mxu0
    %507 = vmatprep.mubr.f32.mxu0 0.0
    %508 = vmatmul.mubr.f32.gmra.mrb[0].mxu0 %v430
    %v509 = vpop.f32.mrb[0].mxu0
    %v510 = vadd.f32 0.0, %v509
    %v511 = vpop.f32.mrb[0].mxu0
    %512 = vdwg.mxu0
    %v514 = vsel %vm425, %v419, 0
    %v517 = vsel %vm425, %v420, 0
    %v520 = vsel %vm425, %v347, 0
    %v523 = vsel %vm425, %v348, 0
    %525 = vmatprep.subr.mxu0 0.0
    %526 = vmatpush1.xpose.msra.mxu0 %v520
    %527 = vmatprep.subr.mxu0 0.0
    %528 = vmatpush1.xpose.msra.mxu0 %v523
    %529 = vmatprep.subr.mxu0 0.0
    %530 = vmatpush1.xpose.msra.mxu0 0.0
    %531 = vmatprep.subr.mxu0 0.0
    %532 = vmatpush1.xpose.msra.mxu0 0.0
    %533 = vmatprep.subr.mxu0 0.0
    %534 = vmatpush1.xpose.msra.mxu0 0.0
    %535 = vmatprep.subr.mxu0 0.0
    %536 = vmatpush1.xpose.msra.mxu0 0.0
    %537 = vmatprep.subr.mxu0 0.0
    %538 = vmatpush1.xpose.msra.mxu0 0.0
    %539 = vmatprep.subr.mxu0 0.0
    %540 = vmatpush1.xpose.msra.mxu0 0.0
    %541 = vmatprep.subr.mxu0 0.0
    %542 = vmatpush1.xpose.msra.mxu0 0.0
    %543 = vmatprep.subr.mxu0 0.0
    %544 = vmatpush1.xpose.msra.mxu0 0.0
    %545 = vmatprep.subr.mxu0 0.0
    %546 = vmatpush1.xpose.msra.mxu0 0.0
    %547 = vmatprep.subr.mxu0 0.0
    %548 = vmatpush1.xpose.msra.mxu0 0.0
    %549 = vmatprep.subr.mxu0 0.0
    %550 = vmatpush1.xpose.msra.mxu0 0.0
    %551 = vmatprep.subr.mxu0 0.0
    %552 = vmatpush1.xpose.msra.mxu0 0.0
    %553 = vmatprep.subr.mxu0 0.0
    %554 = vmatpush1.xpose.msra.mxu0 0.0
    %555 = vmatprep.subr.mxu0 0.0
    %556 = vmatpush1.xpose.msra.mxu0 0.0
    %557 = vmatprep.subr.mxu0 0.0
    %558 = vmatpush1.xpose.msra.mxu0 0.0
    %559 = vmatprep.subr.mxu0 0.0
    %560 = vmatpush1.xpose.msra.mxu0 0.0
    %561 = vmatprep.subr.mxu0 0.0
    %562 = vmatpush1.xpose.msra.mxu0 0.0
    %563 = vmatprep.subr.mxu0 0.0
    %564 = vmatpush1.xpose.msra.mxu0 0.0
    %565 = vmatprep.subr.mxu0 0.0
    %566 = vmatpush1.xpose.msra.mxu0 0.0
    %567 = vmatprep.subr.mxu0 0.0
    %568 = vmatpush1.xpose.msra.mxu0 0.0
    %569 = vmatprep.subr.mxu0 0.0
    %570 = vmatpush1.xpose.msra.mxu0 0.0
    %571 = vmatprep.subr.mxu0 0.0
    %572 = vmatpush1.xpose.msra.mxu0 0.0
    %573 = vmatprep.subr.mxu0 0.0
    %574 = vmatpush1.xpose.msra.mxu0 0.0
    %575 = vmatprep.subr.mxu0 0.0
    %576 = vmatpush1.xpose.msra.mxu0 0.0
    %577 = vmatprep.subr.mxu0 0.0
    %578 = vmatpush1.xpose.msra.mxu0 0.0
    %579 = vmatprep.subr.mxu0 0.0
    %580 = vmatpush1.xpose.msra.mxu0 0.0
    %581 = vmatprep.subr.mxu0 0.0
    %582 = vmatpush1.xpose.msra.mxu0 0.0
    %583 = vmatprep.subr.mxu0 0.0
    %584 = vmatpush1.xpose.msra.mxu0 0.0
    %585 = vmatprep.subr.mxu0 0.0
    %586 = vmatpush1.xpose.msra.mxu0 0.0
    %587 = vmatprep.subr.mxu0 0.0
    %588 = vmatpush1.xpose.msra.mxu0 0.0
    %589 = vmatprep.mubr.f32.mxu0 0.0
    %590 = vmatmul.mubr.f32.gmra.mrb[0].mxu0 %v514
    %v591 = vpop.f32.mrb[0].mxu0
    %v592 = vadd.f32 0.0, %v591
    %v593 = vpop.f32.mrb[0].mxu0
    %594 = vmatprep.mubr.f32.mxu0 0.0
    %595 = vmatmul.mubr.f32.gmra.mrb[0].mxu0 %v517
    %v596 = vpop.f32.mrb[0].mxu0
    %v597 = vadd.f32 0.0, %v596
    %v598 = vpop.f32.mrb[0].mxu0
    %599 = vdwg.mxu0
    %v601 = vsel %vm425, %v421, 0
    %v604 = vsel %vm425, %v422, 0
    %v607 = vsel %vm425, %v349, 0
    %v610 = vsel %vm425, %v350, 0
    %612 = vmatprep.subr.mxu0 0.0
    %613 = vmatpush1.xpose.msra.mxu0 %v607
    %614 = vmatprep.subr.mxu0 0.0
    %615 = vmatpush1.xpose.msra.mxu0 %v610
    %616 = vmatprep.subr.mxu0 0.0
    %617 = vmatpush1.xpose.msra.mxu0 0.0
    %618 = vmatprep.subr.mxu0 0.0
    %619 = vmatpush1.xpose.msra.mxu0 0.0
    %620 = vmatprep.subr.mxu0 0.0
    %621 = vmatpush1.xpose.msra.mxu0 0.0
    %622 = vmatprep.subr.mxu0 0.0
    %623 = vmatpush1.xpose.msra.mxu0 0.0
    %624 = vmatprep.subr.mxu0 0.0
    %625 = vmatpush1.xpose.msra.mxu0 0.0
    %626 = vmatprep.subr.mxu0 0.0
    %627 = vmatpush1.xpose.msra.mxu0 0.0
    %628 = vmatprep.subr.mxu0 0.0
    %629 = vmatpush1.xpose.msra.mxu0 0.0
    %630 = vmatprep.subr.mxu0 0.0
    %631 = vmatpush1.xpose.msra.mxu0 0.0
    %632 = vmatprep.subr.mxu0 0.0
    %633 = vmatpush1.xpose.msra.mxu0 0.0
    %634 = vmatprep.subr.mxu0 0.0
    %635 = vmatpush1.xpose.msra.mxu0 0.0
    %636 = vmatprep.subr.mxu0 0.0
    %637 = vmatpush1.xpose.msra.mxu0 0.0
    %638 = vmatprep.subr.mxu0 0.0
    %639 = vmatpush1.xpose.msra.mxu0 0.0
    %640 = vmatprep.subr.mxu0 0.0
    %641 = vmatpush1.xpose.msra.mxu0 0.0
    %642 = vmatprep.subr.mxu0 0.0
    %643 = vmatpush1.xpose.msra.mxu0 0.0
    %644 = vmatprep.subr.mxu0 0.0
    %645 = vmatpush1.xpose.msra.mxu0 0.0
    %646 = vmatprep.subr.mxu0 0.0
    %647 = vmatpush1.xpose.msra.mxu0 0.0
    %648 = vmatprep.subr.mxu0 0.0
    %649 = vmatpush1.xpose.msra.mxu0 0.0
    %650 = vmatprep.subr.mxu0 0.0
    %651 = vmatpush1.xpose.msra.mxu0 0.0
    %652 = vmatprep.subr.mxu0 0.0
    %653 = vmatpush1.xpose.msra.mxu0 0.0
    %654 = vmatprep.subr.mxu0 0.0
    %655 = vmatpush1.xpose.msra.mxu0 0.0
    %656 = vmatprep.subr.mxu0 0.0
    %657 = vmatpush1.xpose.msra.mxu0 0.0
    %658 = vmatprep.subr.mxu0 0.0
    %659 = vmatpush1.xpose.msra.mxu0 0.0
    %660 = vmatprep.subr.mxu0 0.0
    %661 = vmatpush1.xpose.msra.mxu0 0.0
    %662 = vmatprep.subr.mxu0 0.0
    %663 = vmatpush1.xpose.msra.mxu0 0.0
    %664 = vmatprep.subr.mxu0 0.0
    %665 = vmatpush1.xpose.msra.mxu0 0.0
    %666 = vmatprep.subr.mxu0 0.0
    %667 = vmatpush1.xpose.msra.mxu0 0.0
    %668 = vmatprep.subr.mxu0 0.0
    %669 = vmatpush1.xpose.msra.mxu0 0.0
    %670 = vmatprep.subr.mxu0 0.0
    %671 = vmatpush1.xpose.msra.mxu0 0.0
    %672 = vmatprep.subr.mxu0 0.0
    %673 = vmatpush1.xpose.msra.mxu0 0.0
    %674 = vmatprep.subr.mxu0 0.0
    %675 = vmatpush1.xpose.msra.mxu0 0.0
    %676 = vmatprep.mubr.f32.mxu0 0.0
    %677 = vmatmul.mubr.f32.gmra.mrb[0].mxu0 %v601
    %v678 = vpop.f32.mrb[0].mxu0
    %v679 = vadd.f32 0.0, %v678
    %v680 = vpop.f32.mrb[0].mxu0
    %681 = vmatprep.mubr.f32.mxu0 0.0
    %682 = vmatmul.mubr.f32.gmra.mrb[0].mxu0 %v604
    %v683 = vpop.f32.mrb[0].mxu0
    %v684 = vadd.f32 0.0, %v683
    %v685 = vpop.f32.mrb[0].mxu0
    %686 = vdwg.mxu0
    %v688 = vsel %vm425, %v423, 0
    %v691 = vsel %vm425, %v424, 0
    %v694 = vsel %vm425, %v351, 0
    %v697 = vsel %vm425, %v352, 0
    %699 = vmatprep.subr.mxu0 0.0
    %700 = vmatpush1.xpose.msra.mxu0 %v694
    %701 = vmatprep.subr.mxu0 0.0
    %702 = vmatpush1.xpose.msra.mxu0 %v697
    %703 = vmatprep.subr.mxu0 0.0
    %704 = vmatpush1.xpose.msra.mxu0 0.0
    %705 = vmatprep.subr.mxu0 0.0
    %706 = vmatpush1.xpose.msra.mxu0 0.0
    %707 = vmatprep.subr.mxu0 0.0
    %708 = vmatpush1.xpose.msra.mxu0 0.0
    %709 = vmatprep.subr.mxu0 0.0
    %710 = vmatpush1.xpose.msra.mxu0 0.0
    %711 = vmatprep.subr.mxu0 0.0
    %712 = vmatpush1.xpose.msra.mxu0 0.0
    %713 = vmatprep.subr.mxu0 0.0
    %714 = vmatpush1.xpose.msra.mxu0 0.0
    %715 = vmatprep.subr.mxu0 0.0
    %716 = vmatpush1.xpose.msra.mxu0 0.0
    %717 = vmatprep.subr.mxu0 0.0
    %718 = vmatpush1.xpose.msra.mxu0 0.0
    %719 = vmatprep.subr.mxu0 0.0
    %720 = vmatpush1.xpose.msra.mxu0 0.0
    %721 = vmatprep.subr.mxu0 0.0
    %722 = vmatpush1.xpose.msra.mxu0 0.0
    %723 = vmatprep.subr.mxu0 0.0
    %724 = vmatpush1.xpose.msra.mxu0 0.0
    %725 = vmatprep.subr.mxu0 0.0
    %726 = vmatpush1.xpose.msra.mxu0 0.0
    %727 = vmatprep.subr.mxu0 0.0
    %728 = vmatpush1.xpose.msra.mxu0 0.0
    %729 = vmatprep.subr.mxu0 0.0
    %730 = vmatpush1.xpose.msra.mxu0 0.0
    %731 = vmatprep.subr.mxu0 0.0
    %732 = vmatpush1.xpose.msra.mxu0 0.0
    %733 = vmatprep.subr.mxu0 0.0
    %734 = vmatpush1.xpose.msra.mxu0 0.0
    %735 = vmatprep.subr.mxu0 0.0
    %736 = vmatpush1.xpose.msra.mxu0 0.0
    %737 = vmatprep.subr.mxu0 0.0
    %738 = vmatpush1.xpose.msra.mxu0 0.0
    %739 = vmatprep.subr.mxu0 0.0
    %740 = vmatpush1.xpose.msra.mxu0 0.0
    %741 = vmatprep.subr.mxu0 0.0
    %742 = vmatpush1.xpose.msra.mxu0 0.0
    %743 = vmatprep.subr.mxu0 0.0
    %744 = vmatpush1.xpose.msra.mxu0 0.0
    %745 = vmatprep.subr.mxu0 0.0
    %746 = vmatpush1.xpose.msra.mxu0 0.0
    %747 = vmatprep.subr.mxu0 0.0
    %748 = vmatpush1.xpose.msra.mxu0 0.0
    %749 = vmatprep.subr.mxu0 0.0
    %750 = vmatpush1.xpose.msra.mxu0 0.0
    %751 = vmatprep.subr.mxu0 0.0
    %752 = vmatpush1.xpose.msra.mxu0 0.0
    %753 = vmatprep.subr.mxu0 0.0
    %754 = vmatpush1.xpose.msra.mxu0 0.0
    %755 = vmatprep.subr.mxu0 0.0
    %756 = vmatpush1.xpose.msra.mxu0 0.0
    %757 = vmatprep.subr.mxu0 0.0
    %758 = vmatpush1.xpose.msra.mxu0 0.0
    %759 = vmatprep.subr.mxu0 0.0
    %760 = vmatpush1.xpose.msra.mxu0 0.0
    %761 = vmatprep.subr.mxu0 0.0
    %762 = vmatpush1.xpose.msra.mxu0 0.0
    %763 = vmatprep.mubr.f32.mxu0 0.0
    %764 = vmatmul.mubr.f32.gmra.mrb[0].mxu0 %v688
    %v765 = vpop.f32.mrb[0].mxu0
    %v766 = vadd.f32 0.0, %v765
    %v767 = vpop.f32.mrb[0].mxu0
    %768 = vmatprep.mubr.f32.mxu0 0.0
    %769 = vmatmul.mubr.f32.gmra.mrb[0].mxu0 %v691
    %v770 = vpop.f32.mrb[0].mxu0
    %v771 = vadd.f32 0.0, %v770
    %v772 = vpop.f32.mrb[0].mxu0
    %773 = vdwg.mxu0
    %782 = vrot.lane.b32.xlu0 %v505, 1
    %v783 = vpop.permute.xlu0 %782
    %784 = vrot.lane.b32.xlu0 %v510, 1
    %v785 = vpop.permute.xlu0 %784
    %786 = vrot.lane.b32.xlu0 %v592, 1
    %v787 = vpop.permute.xlu0 %786
    %788 = vrot.lane.b32.xlu0 %v597, 1
    %v789 = vpop.permute.xlu0 %788
    %790 = vrot.lane.b32.xlu0 %v679, 1
    %v791 = vpop.permute.xlu0 %790
    %792 = vrot.lane.b32.xlu0 %v684, 1
    %v793 = vpop.permute.xlu0 %792
    %794 = vrot.lane.b32.xlu0 %v766, 1
    %v795 = vpop.permute.xlu0 %794
    %796 = vrot.lane.b32.xlu0 %v771, 1
    %v797 = vpop.permute.xlu0 %796
    %806 = vrot.lane.b32.xlu0 %v505, 2
    %v807 = vpop.permute.xlu0 %806
    %808 = vrot.lane.b32.xlu0 %v510, 2
    %v809 = vpop.permute.xlu0 %808
    %810 = vrot.lane.b32.xlu0 %v592, 2
    %v811 = vpop.permute.xlu0 %810
    %812 = vrot.lane.b32.xlu0 %v597, 2
    %v813 = vpop.permute.xlu0 %812
    %814 = vrot.lane.b32.xlu0 %v679, 2
    %v815 = vpop.permute.xlu0 %814
    %816 = vrot.lane.b32.xlu0 %v684, 2
    %v817 = vpop.permute.xlu0 %816
    %818 = vrot.lane.b32.xlu0 %v766, 2
    %v819 = vpop.permute.xlu0 %818
    %820 = vrot.lane.b32.xlu0 %v771, 2
    %v821 = vpop.permute.xlu0 %820
    %830 = vrot.lane.b32.xlu0 %v505, 3
    %v831 = vpop.permute.xlu0 %830
    %832 = vrot.lane.b32.xlu0 %v510, 3
    %v833 = vpop.permute.xlu0 %832
    %834 = vrot.lane.b32.xlu0 %v592, 3
    %v835 = vpop.permute.xlu0 %834
    %836 = vrot.lane.b32.xlu0 %v597, 3
    %v837 = vpop.permute.xlu0 %836
    %838 = vrot.lane.b32.xlu0 %v679, 3
    %v839 = vpop.permute.xlu0 %838
    %840 = vrot.lane.b32.xlu0 %v684, 3
    %v841 = vpop.permute.xlu0 %840
    %842 = vrot.lane.b32.xlu0 %v766, 3
    %v843 = vpop.permute.xlu0 %842
    %844 = vrot.lane.b32.xlu0 %v771, 3
    %v845 = vpop.permute.xlu0 %844
    %854 = vrot.lane.b32.xlu0 %v505, 4
    %v855 = vpop.permute.xlu0 %854
    %856 = vrot.lane.b32.xlu0 %v510, 4
    %v857 = vpop.permute.xlu0 %856
    %858 = vrot.lane.b32.xlu0 %v592, 4
    %v859 = vpop.permute.xlu0 %858
    %860 = vrot.lane.b32.xlu0 %v597, 4
    %v861 = vpop.permute.xlu0 %860
    %862 = vrot.lane.b32.xlu0 %v679, 4
    %v863 = vpop.permute.xlu0 %862
    %864 = vrot.lane.b32.xlu0 %v684, 4
    %v865 = vpop.permute.xlu0 %864
    %866 = vrot.lane.b32.xlu0 %v766, 4
    %v867 = vpop.permute.xlu0 %866
    %868 = vrot.lane.b32.xlu0 %v771, 4
    %v869 = vpop.permute.xlu0 %868
    %878 = vrot.lane.b32.xlu0 %v505, 5
    %v879 = vpop.permute.xlu0 %878
    %880 = vrot.lane.b32.xlu0 %v510, 5
    %v881 = vpop.permute.xlu0 %880
    %882 = vrot.lane.b32.xlu0 %v592, 5
    %v883 = vpop.permute.xlu0 %882
    %884 = vrot.lane.b32.xlu0 %v597, 5
    %v885 = vpop.permute.xlu0 %884
    %886 = vrot.lane.b32.xlu0 %v679, 5
    %v887 = vpop.permute.xlu0 %886
    %888 = vrot.lane.b32.xlu0 %v684, 5
    %v889 = vpop.permute.xlu0 %888
    %890 = vrot.lane.b32.xlu0 %v766, 5
    %v891 = vpop.permute.xlu0 %890
    %892 = vrot.lane.b32.xlu0 %v771, 5
    %v893 = vpop.permute.xlu0 %892
    %902 = vrot.lane.b32.xlu0 %v505, 6
    %v903 = vpop.permute.xlu0 %902
    %904 = vrot.lane.b32.xlu0 %v510, 6
    %v905 = vpop.permute.xlu0 %904
    %906 = vrot.lane.b32.xlu0 %v592, 6
    %v907 = vpop.permute.xlu0 %906
    %908 = vrot.lane.b32.xlu0 %v597, 6
    %v909 = vpop.permute.xlu0 %908
    %910 = vrot.lane.b32.xlu0 %v679, 6
    %v911 = vpop.permute.xlu0 %910
    %912 = vrot.lane.b32.xlu0 %v684, 6
    %v913 = vpop.permute.xlu0 %912
    %914 = vrot.lane.b32.xlu0 %v766, 6
    %v915 = vpop.permute.xlu0 %914
    %916 = vrot.lane.b32.xlu0 %v771, 6
    %v917 = vpop.permute.xlu0 %916
    %926 = vrot.lane.b32.xlu0 %v505, 7
    %v927 = vpop.permute.xlu0 %926
    %928 = vrot.lane.b32.xlu0 %v510, 7
    %v929 = vpop.permute.xlu0 %928
    %930 = vrot.lane.b32.xlu0 %v592, 7
    %v931 = vpop.permute.xlu0 %930
    %932 = vrot.lane.b32.xlu0 %v597, 7
    %v933 = vpop.permute.xlu0 %932
    %934 = vrot.lane.b32.xlu0 %v679, 7
    %v935 = vpop.permute.xlu0 %934
    %936 = vrot.lane.b32.xlu0 %v684, 7
    %v937 = vpop.permute.xlu0 %936
    %938 = vrot.lane.b32.xlu0 %v766, 7
    %v939 = vpop.permute.xlu0 %938
    %940 = vrot.lane.b32.xlu0 %v771, 7
    %v941 = vpop.permute.xlu0 %940
    %vm950 = vcmask 1040384
    %v951 = vsel %vm950, %v505, %v783
    %v952 = vsel %vm950, %v510, %v785
    %v953 = vsel %vm950, %v592, %v787
    %v954 = vsel %vm950, %v597, %v789
    %v955 = vsel %vm950, %v679, %v791
    %v956 = vsel %vm950, %v684, %v793
    %v957 = vsel %vm950, %v766, %v795
    %v958 = vsel %vm950, %v771, %v797
    %vm959 = vcmask 1041408
    %v960 = vsel %vm959, %v951, %v807
    %v961 = vsel %vm959, %v952, %v809
    %v962 = vsel %vm959, %v953, %v811
    %v963 = vsel %vm959, %v954, %v813
    %v964 = vsel %vm959, %v955, %v815
    %v965 = vsel %vm959, %v956, %v817
    %v966 = vsel %vm959, %v957, %v819
    %v967 = vsel %vm959, %v958, %v821
    %vm968 = vcmask 1042432
    %v969 = vsel %vm968, %v960, %v831
    %v970 = vsel %vm968, %v961, %v833
    %v971 = vsel %vm968, %v962, %v835
    %v972 = vsel %vm968, %v963, %v837
    %v973 = vsel %vm968, %v964, %v839
    %v974 = vsel %vm968, %v965, %v841
    %v975 = vsel %vm968, %v966, %v843
    %v976 = vsel %vm968, %v967, %v845
    %vm977 = vcmask 1043456
    %v978 = vsel %vm977, %v969, %v855
    %v979 = vsel %vm977, %v970, %v857
    %v980 = vsel %vm977, %v971, %v859
    %v981 = vsel %vm977, %v972, %v861
    %v982 = vsel %vm977, %v973, %v863
    %v983 = vsel %vm977, %v974, %v865
    %v984 = vsel %vm977, %v975, %v867
    %v985 = vsel %vm977, %v976, %v869
    %vm986 = vcmask 1044480
    %v987 = vsel %vm986, %v978, %v879
    %v988 = vsel %vm986, %v979, %v881
    %v989 = vsel %vm986, %v980, %v883
    %v990 = vsel %vm986, %v981, %v885
    %v991 = vsel %vm986, %v982, %v887
    %v992 = vsel %vm986, %v983, %v889
    %v993 = vsel %vm986, %v984, %v891
    %v994 = vsel %vm986, %v985, %v893
    %vm995 = vcmask 1045504
    %v996 = vsel %vm995, %v987, %v903
    %v997 = vsel %vm995, %v988, %v905
    %v998 = vsel %vm995, %v989, %v907
    %v999 = vsel %vm995, %v990, %v909
    %v1000 = vsel %vm995, %v991, %v911
    %v1001 = vsel %vm995, %v992, %v913
    %v1002 = vsel %vm995, %v993, %v915
    %v1003 = vsel %vm995, %v994, %v917
    %vm1004 = vcmask 1046528
    %v1005 = vsel %vm1004, %v996, %v927
    %v1006 = vsel %vm1004, %v997, %v929
    %v1007 = vsel %vm1004, %v998, %v931
    %v1008 = vsel %vm1004, %v999, %v933
    %v1009 = vsel %vm1004, %v1000, %v935
    %v1010 = vsel %vm1004, %v1001, %v937
    %v1011 = vsel %vm1004, %v1002, %v939
    %v1012 = vsel %vm1004, %v1003, %v941
    %v1013 = vld [vmem:[%s1] sm:$0x1]
    %v1014 = vld [vmem:[%s1 + $0x1] sm:$0x1]
    %1016 = vrot.lane.b32.xlu0 %v1005, 121
    %v1017 = vpop.permute.xlu0 %1016
    %v1020 = vsel %vm425, %v381, 0
    %v1022 = vsel %vm425, %v208, 0
    %1024 = vmatprep.subr.mxu0 0.0
    %1025 = vmatpush1.xpose.msra.mxu0 %v1022
    %1026 = vmatprep.subr.mxu0 0.0
    %1027 = vmatpush1.xpose.msra.mxu0 0.0
    %1028 = vmatprep.subr.mxu0 0.0
    %1029 = vmatpush1.xpose.msra.mxu0 0.0
    %1030 = vmatprep.subr.mxu0 0.0
    %1031 = vmatpush1.xpose.msra.mxu0 0.0
    %1032 = vmatprep.subr.mxu0 0.0
    %1033 = vmatpush1.xpose.msra.mxu0 0.0
    %1034 = vmatprep.subr.mxu0 0.0
    %1035 = vmatpush1.xpose.msra.mxu0 0.0
    %1036 = vmatprep.subr.mxu0 0.0
    %1037 = vmatpush1.xpose.msra.mxu0 0.0
    %1038 = vmatprep.subr.mxu0 0.0
    %1039 = vmatpush1.xpose.msra.mxu0 0.0
    %1040 = vmatprep.subr.mxu0 0.0
    %1041 = vmatpush1.xpose.msra.mxu0 0.0
    %1042 = vmatprep.subr.mxu0 0.0
    %1043 = vmatpush1.xpose.msra.mxu0 0.0
    %1044 = vmatprep.subr.mxu0 0.0
    %1045 = vmatpush1.xpose.msra.mxu0 0.0
    %1046 = vmatprep.subr.mxu0 0.0
    %1047 = vmatpush1.xpose.msra.mxu0 0.0
    %1048 = vmatprep.subr.mxu0 0.0
    %1049 = vmatpush1.xpose.msra.mxu0 0.0
    %1050 = vmatprep.subr.mxu0 0.0
    %1051 = vmatpush1.xpose.msra.mxu0 0.0
    %1052 = vmatprep.subr.mxu0 0.0
    %1053 = vmatpush1.xpose.msra.mxu0 0.0
    %1054 = vmatprep.subr.mxu0 0.0
    %1055 = vmatpush1.xpose.msra.mxu0 0.0
    %1056 = vmatprep.subr.mxu0 0.0
    %1057 = vmatpush1.xpose.msra.mxu0 0.0
    %1058 = vmatprep.subr.mxu0 0.0
    %1059 = vmatpush1.xpose.msra.mxu0 0.0
    %1060 = vmatprep.subr.mxu0 0.0
    %1061 = vmatpush1.xpose.msra.mxu0 0.0
    %1062 = vmatprep.subr.mxu0 0.0
    %1063 = vmatpush1.xpose.msra.mxu0 0.0
    %1064 = vmatprep.subr.mxu0 0.0
    %1065 = vmatpush1.xpose.msra.mxu0 0.0
    %1066 = vmatprep.subr.mxu0 0.0
    %1067 = vmatpush1.xpose.msra.mxu0 0.0
    %1068 = vmatprep.subr.mxu0 0.0
    %1069 = vmatpush1.xpose.msra.mxu0 0.0
    %1070 = vmatprep.subr.mxu0 0.0
    %1071 = vmatpush1.xpose.msra.mxu0 0.0
    %1072 = vmatprep.subr.mxu0 0.0
    %1073 = vmatpush1.xpose.msra.mxu0 0.0
    %1074 = vmatprep.subr.mxu0 0.0
    %1075 = vmatpush1.xpose.msra.mxu0 0.0
    %1076 = vmatprep.subr.mxu0 0.0
    %1077 = vmatpush1.xpose.msra.mxu0 0.0
    %1078 = vmatprep.subr.mxu0 0.0
    %1079 = vmatpush1.xpose.msra.mxu0 0.0
    %1080 = vmatprep.subr.mxu0 0.0
    %1081 = vmatpush1.xpose.msra.mxu0 0.0
    %1082 = vmatprep.subr.mxu0 0.0
    %1083 = vmatpush1.xpose.msra.mxu0 0.0
    %1084 = vmatprep.subr.mxu0 0.0
    %1085 = vmatpush1.xpose.msra.mxu0 0.0
    %1086 = vmatprep.subr.mxu0 0.0
    %1087 = vmatpush1.xpose.msra.mxu0 0.0
    %1088 = vmatprep.mubr.f32.mxu0 0.0
    %1089 = vmatmul.mubr.f32.gmra.mrb[0].mxu0 %v1020
    %v1090 = vpop.f32.mrb[0].mxu0
    %v1091 = vadd.f32 %v1017, %v1090
    %v1092 = vpop.f32.mrb[0].mxu0
    %1093 = vdwg.mxu0
    %1095 = vrot.lane.b32.xlu0 %v1006, 121
    %v1096 = vpop.permute.xlu0 %1095
    %v1099 = vsel %vm425, %v382, 0
    %v1101 = vsel %vm425, %v214, 0
    %1103 = vmatprep.subr.mxu0 0.0
    %1104 = vmatpush1.xpose.msra.mxu0 %v1101
    %1105 = vmatprep.subr.mxu0 0.0
    %1106 = vmatpush1.xpose.msra.mxu0 0.0
    %1107 = vmatprep.subr.mxu0 0.0
    %1108 = vmatpush1.xpose.msra.mxu0 0.0
    %1109 = vmatprep.subr.mxu0 0.0
    %1110 = vmatpush1.xpose.msra.mxu0 0.0
    %1111 = vmatprep.subr.mxu0 0.0
    %1112 = vmatpush1.xpose.msra.mxu0 0.0
    %1113 = vmatprep.subr.mxu0 0.0
    %1114 = vmatpush1.xpose.msra.mxu0 0.0
    %1115 = vmatprep.subr.mxu0 0.0
    %1116 = vmatpush1.xpose.msra.mxu0 0.0
    %1117 = vmatprep.subr.mxu0 0.0
    %1118 = vmatpush1.xpose.msra.mxu0 0.0
    %1119 = vmatprep.subr.mxu0 0.0
    %1120 = vmatpush1.xpose.msra.mxu0 0.0
    %1121 = vmatprep.subr.mxu0 0.0
    %1122 = vmatpush1.xpose.msra.mxu0 0.0
    %1123 = vmatprep.subr.mxu0 0.0
    %1124 = vmatpush1.xpose.msra.mxu0 0.0
    %1125 = vmatprep.subr.mxu0 0.0
    %1126 = vmatpush1.xpose.msra.mxu0 0.0
    %1127 = vmatprep.subr.mxu0 0.0
    %1128 = vmatpush1.xpose.msra.mxu0 0.0
    %1129 = vmatprep.subr.mxu0 0.0
    %1130 = vmatpush1.xpose.msra.mxu0 0.0
    %1131 = vmatprep.subr.mxu0 0.0
    %1132 = vmatpush1.xpose.msra.mxu0 0.0
    %1133 = vmatprep.subr.mxu0 0.0
    %1134 = vmatpush1.xpose.msra.mxu0 0.0
    %1135 = vmatprep.subr.mxu0 0.0
    %1136 = vmatpush1.xpose.msra.mxu0 0.0
    %1137 = vmatprep.subr.mxu0 0.0
    %1138 = vmatpush1.xpose.msra.mxu0 0.0
    %1139 = vmatprep.subr.mxu0 0.0
    %1140 = vmatpush1.xpose.msra.mxu0 0.0
    %1141 = vmatprep.subr.mxu0 0.0
    %1142 = vmatpush1.xpose.msra.mxu0 0.0
    %1143 = vmatprep.subr.mxu0 0.0
    %1144 = vmatpush1.xpose.msra.mxu0 0.0
    %1145 = vmatprep.subr.mxu0 0.0
    %1146 = vmatpush1.xpose.msra.mxu0 0.0
    %1147 = vmatprep.subr.mxu0 0.0
    %1148 = vmatpush1.xpose.msra.mxu0 0.0
    %1149 = vmatprep.subr.mxu0 0.0
    %1150 = vmatpush1.xpose.msra.mxu0 0.0
    %1151 = vmatprep.subr.mxu0 0.0
    %1152 = vmatpush1.xpose.msra.mxu0 0.0
    %1153 = vmatprep.subr.mxu0 0.0
    %1154 = vmatpush1.xpose.msra.mxu0 0.0
    %1155 = vmatprep.subr.mxu0 0.0
    %1156 = vmatpush1.xpose.msra.mxu0 0.0
    %1157 = vmatprep.subr.mxu0 0.0
    %1158 = vmatpush1.xpose.msra.mxu0 0.0
    %1159 = vmatprep.subr.mxu0 0.0
    %1160 = vmatpush1.xpose.msra.mxu0 0.0
    %1161 = vmatprep.subr.mxu0 0.0
    %1162 = vmatpush1.xpose.msra.mxu0 0.0
    %1163 = vmatprep.subr.mxu0 0.0
    %1164 = vmatpush1.xpose.msra.mxu0 0.0
    %1165 = vmatprep.subr.mxu0 0.0
    %1166 = vmatpush1.xpose.msra.mxu0 0.0
    %1167 = vmatprep.mubr.f32.mxu0 0.0
    %1168 = vmatmul.mubr.f32.gmra.mrb[0].mxu0 %v1099
    %v1169 = vpop.f32.mrb[0].mxu0
    %v1170 = vadd.f32 %v1096, %v1169
    %v1171 = vpop.f32.mrb[0].mxu0
    %1172 = vdwg.mxu0
    %1174 = vrot.lane.b32.xlu0 %v1007, 121
    %v1175 = vpop.permute.xlu0 %1174
    %v1178 = vsel %vm425, %v383, 0
    %v1180 = vsel %vm425, %v314, 0
    %1182 = vmatprep.subr.mxu0 0.0
    %1183 = vmatpush1.xpose.msra.mxu0 %v1180
    %1184 = vmatprep.subr.mxu0 0.0
    %1185 = vmatpush1.xpose.msra.mxu0 0.0
    %1186 = vmatprep.subr.mxu0 0.0
    %1187 = vmatpush1.xpose.msra.mxu0 0.0
    %1188 = vmatprep.subr.mxu0 0.0
    %1189 = vmatpush1.xpose.msra.mxu0 0.0
    %1190 = vmatprep.subr.mxu0 0.0
    %1191 = vmatpush1.xpose.msra.mxu0 0.0
    %1192 = vmatprep.subr.mxu0 0.0
    %1193 = vmatpush1.xpose.msra.mxu0 0.0
    %1194 = vmatprep.subr.mxu0 0.0
    %1195 = vmatpush1.xpose.msra.mxu0 0.0
    %1196 = vmatprep.subr.mxu0 0.0
    %1197 = vmatpush1.xpose.msra.mxu0 0.0
    %1198 = vmatprep.subr.mxu0 0.0
    %1199 = vmatpush1.xpose.msra.mxu0 0.0
    %1200 = vmatprep.subr.mxu0 0.0
    %1201 = vmatpush1.xpose.msra.mxu0 0.0
    %1202 = vmatprep.subr.mxu0 0.0
    %1203 = vmatpush1.xpose.msra.mxu0 0.0
    %1204 = vmatprep.subr.mxu0 0.0
    %1205 = vmatpush1.xpose.msra.mxu0 0.0
    %1206 = vmatprep.subr.mxu0 0.0
    %1207 = vmatpush1.xpose.msra.mxu0 0.0
    %1208 = vmatprep.subr.mxu0 0.0
    %1209 = vmatpush1.xpose.msra.mxu0 0.0
    %1210 = vmatprep.subr.mxu0 0.0
    %1211 = vmatpush1.xpose.msra.mxu0 0.0
    %1212 = vmatprep.subr.mxu0 0.0
    %1213 = vmatpush1.xpose.msra.mxu0 0.0
    %1214 = vmatprep.subr.mxu0 0.0
    %1215 = vmatpush1.xpose.msra.mxu0 0.0
    %1216 = vmatprep.subr.mxu0 0.0
    %1217 = vmatpush1.xpose.msra.mxu0 0.0
    %1218 = vmatprep.subr.mxu0 0.0
    %1219 = vmatpush1.xpose.msra.mxu0 0.0
    %1220 = vmatprep.subr.mxu0 0.0
    %1221 = vmatpush1.xpose.msra.mxu0 0.0
    %1222 = vmatprep.subr.mxu0 0.0
    %1223 = vmatpush1.xpose.msra.mxu0 0.0
    %1224 = vmatprep.subr.mxu0 0.0
    %1225 = vmatpush1.xpose.msra.mxu0 0.0
    %1226 = vmatprep.subr.mxu0 0.0
    %1227 = vmatpush1.xpose.msra.mxu0 0.0
    %1228 = vmatprep.subr.mxu0 0.0
    %1229 = vmatpush1.xpose.msra.mxu0 0.0
    %1230 = vmatprep.subr.mxu0 0.0
    %1231 = vmatpush1.xpose.msra.mxu0 0.0
    %1232 = vmatprep.subr.mxu0 0.0
    %1233 = vmatpush1.xpose.msra.mxu0 0.0
    %1234 = vmatprep.subr.mxu0 0.0
    %1235 = vmatpush1.xpose.msra.mxu0 0.0
    %1236 = vmatprep.subr.mxu0 0.0
    %1237 = vmatpush1.xpose.msra.mxu0 0.0
    %1238 = vmatprep.subr.mxu0 0.0
    %1239 = vmatpush1.xpose.msra.mxu0 0.0
    %1240 = vmatprep.subr.mxu0 0.0
    %1241 = vmatpush1.xpose.msra.mxu0 0.0
    %1242 = vmatprep.subr.mxu0 0.0
    %1243 = vmatpush1.xpose.msra.mxu0 0.0
    %1244 = vmatprep.subr.mxu0 0.0
    %1245 = vmatpush1.xpose.msra.mxu0 0.0
    %1246 = vmatprep.mubr.f32.mxu0 0.0
    %1247 = vmatmul.mubr.f32.gmra.mrb[0].mxu0 %v1178
    %v1248 = vpop.f32.mrb[0].mxu0
    %v1249 = vadd.f32 %v1175, %v1248
    %v1250 = vpop.f32.mrb[0].mxu0
    %1251 = vdwg.mxu0
    %1253 = vrot.lane.b32.xlu0 %v1008, 121
    %v1254 = vpop.permute.xlu0 %1253
    %v1257 = vsel %vm425, %v384, 0
    %v1259 = vsel %vm425, %v316, 0
    %1261 = vmatprep.subr.mxu0 0.0
    %1262 = vmatpush1.xpose.msra.mxu0 %v1259
    %1263 = vmatprep.subr.mxu0 0.0
    %1264 = vmatpush1.xpose.msra.mxu0 0.0
    %1265 = vmatprep.subr.mxu0 0.0
    %1266 = vmatpush1.xpose.msra.mxu0 0.0
    %1267 = vmatprep.subr.mxu0 0.0
    %1268 = vmatpush1.xpose.msra.mxu0 0.0
    %1269 = vmatprep.subr.mxu0 0.0
    %1270 = vmatpush1.xpose.msra.mxu0 0.0
    %1271 = vmatprep.subr.mxu0 0.0
    %1272 = vmatpush1.xpose.msra.mxu0 0.0
    %1273 = vmatprep.subr.mxu0 0.0
    %1274 = vmatpush1.xpose.msra.mxu0 0.0
    %1275 = vmatprep.subr.mxu0 0.0
    %1276 = vmatpush1.xpose.msra.mxu0 0.0
    %1277 = vmatprep.subr.mxu0 0.0
    %1278 = vmatpush1.xpose.msra.mxu0 0.0
    %1279 = vmatprep.subr.mxu0 0.0
    %1280 = vmatpush1.xpose.msra.mxu0 0.0
    %1281 = vmatprep.subr.mxu0 0.0
    %1282 = vmatpush1.xpose.msra.mxu0 0.0
    %1283 = vmatprep.subr.mxu0 0.0
    %1284 = vmatpush1.xpose.msra.mxu0 0.0
    %1285 = vmatprep.subr.mxu0 0.0
    %1286 = vmatpush1.xpose.msra.mxu0 0.0
    %1287 = vmatprep.subr.mxu0 0.0
    %1288 = vmatpush1.xpose.msra.mxu0 0.0
    %1289 = vmatprep.subr.mxu0 0.0
    %1290 = vmatpush1.xpose.msra.mxu0 0.0
    %1291 = vmatprep.subr.mxu0 0.0
    %1292 = vmatpush1.xpose.msra.mxu0 0.0
    %1293 = vmatprep.subr.mxu0 0.0
    %1294 = vmatpush1.xpose.msra.mxu0 0.0
    %1295 = vmatprep.subr.mxu0 0.0
    %1296 = vmatpush1.xpose.msra.mxu0 0.0
    %1297 = vmatprep.subr.mxu0 0.0
    %1298 = vmatpush1.xpose.msra.mxu0 0.0
    %1299 = vmatprep.subr.mxu0 0.0
    %1300 = vmatpush1.xpose.msra.mxu0 0.0
    %1301 = vmatprep.subr.mxu0 0.0
    %1302 = vmatpush1.xpose.msra.mxu0 0.0
    %1303 = vmatprep.subr.mxu0 0.0
    %1304 = vmatpush1.xpose.msra.mxu0 0.0
    %1305 = vmatprep.subr.mxu0 0.0
    %1306 = vmatpush1.xpose.msra.mxu0 0.0
    %1307 = vmatprep.subr.mxu0 0.0
    %1308 = vmatpush1.xpose.msra.mxu0 0.0
    %1309 = vmatprep.subr.mxu0 0.0
    %1310 = vmatpush1.xpose.msra.mxu0 0.0
    %1311 = vmatprep.subr.mxu0 0.0
    %1312 = vmatpush1.xpose.msra.mxu0 0.0
    %1313 = vmatprep.subr.mxu0 0.0
    %1314 = vmatpush1.xpose.msra.mxu0 0.0
    %1315 = vmatprep.subr.mxu0 0.0
    %1316 = vmatpush1.xpose.msra.mxu0 0.0
    %1317 = vmatprep.subr.mxu0 0.0
    %1318 = vmatpush1.xpose.msra.mxu0 0.0
    %1319 = vmatprep.subr.mxu0 0.0
    %1320 = vmatpush1.xpose.msra.mxu0 0.0
    %1321 = vmatprep.subr.mxu0 0.0
    %1322 = vmatpush1.xpose.msra.mxu0 0.0
    %1323 = vmatprep.subr.mxu0 0.0
    %1324 = vmatpush1.xpose.msra.mxu0 0.0
    %1325 = vmatprep.mubr.f32.mxu0 0.0
    %1326 = vmatmul.mubr.f32.gmra.mrb[0].mxu0 %v1257
    %v1327 = vpop.f32.mrb[0].mxu0
    %v1328 = vadd.f32 %v1254, %v1327
    %v1329 = vpop.f32.mrb[0].mxu0
    %1330 = vdwg.mxu0
    %1332 = vrot.lane.b32.xlu0 %v1009, 121
    %v1333 = vpop.permute.xlu0 %1332
    %v1336 = vsel %vm425, %v385, 0
    %v1338 = vsel %vm425, %v318, 0
    %1340 = vmatprep.subr.mxu0 0.0
    %1341 = vmatpush1.xpose.msra.mxu0 %v1338
    %1342 = vmatprep.subr.mxu0 0.0
    %1343 = vmatpush1.xpose.msra.mxu0 0.0
    %1344 = vmatprep.subr.mxu0 0.0
    %1345 = vmatpush1.xpose.msra.mxu0 0.0
    %1346 = vmatprep.subr.mxu0 0.0
    %1347 = vmatpush1.xpose.msra.mxu0 0.0
    %1348 = vmatprep.subr.mxu0 0.0
    %1349 = vmatpush1.xpose.msra.mxu0 0.0
    %1350 = vmatprep.subr.mxu0 0.0
    %1351 = vmatpush1.xpose.msra.mxu0 0.0
    %1352 = vmatprep.subr.mxu0 0.0
    %1353 = vmatpush1.xpose.msra.mxu0 0.0
    %1354 = vmatprep.subr.mxu0 0.0
    %1355 = vmatpush1.xpose.msra.mxu0 0.0
    %1356 = vmatprep.subr.mxu0 0.0
    %1357 = vmatpush1.xpose.msra.mxu0 0.0
    %1358 = vmatprep.subr.mxu0 0.0
    %1359 = vmatpush1.xpose.msra.mxu0 0.0
    %1360 = vmatprep.subr.mxu0 0.0
    %1361 = vmatpush1.xpose.msra.mxu0 0.0
    %1362 = vmatprep.subr.mxu0 0.0
    %1363 = vmatpush1.xpose.msra.mxu0 0.0
    %1364 = vmatprep.subr.mxu0 0.0
    %1365 = vmatpush1.xpose.msra.mxu0 0.0
    %1366 = vmatprep.subr.mxu0 0.0
    %1367 = vmatpush1.xpose.msra.mxu0 0.0
    %1368 = vmatprep.subr.mxu0 0.0
    %1369 = vmatpush1.xpose.msra.mxu0 0.0
    %1370 = vmatprep.subr.mxu0 0.0
    %1371 = vmatpush1.xpose.msra.mxu0 0.0
    %1372 = vmatprep.subr.mxu0 0.0
    %1373 = vmatpush1.xpose.msra.mxu0 0.0
    %1374 = vmatprep.subr.mxu0 0.0
    %1375 = vmatpush1.xpose.msra.mxu0 0.0
    %1376 = vmatprep.subr.mxu0 0.0
    %1377 = vmatpush1.xpose.msra.mxu0 0.0
    %1378 = vmatprep.subr.mxu0 0.0
    %1379 = vmatpush1.xpose.msra.mxu0 0.0
    %1380 = vmatprep.subr.mxu0 0.0
    %1381 = vmatpush1.xpose.msra.mxu0 0.0
    %1382 = vmatprep.subr.mxu0 0.0
    %1383 = vmatpush1.xpose.msra.mxu0 0.0
    %1384 = vmatprep.subr.mxu0 0.0
    %1385 = vmatpush1.xpose.msra.mxu0 0.0
    %1386 = vmatprep.subr.mxu0 0.0
    %1387 = vmatpush1.xpose.msra.mxu0 0.0
    %1388 = vmatprep.subr.mxu0 0.0
    %1389 = vmatpush1.xpose.msra.mxu0 0.0
    %1390 = vmatprep.subr.mxu0 0.0
    %1391 = vmatpush1.xpose.msra.mxu0 0.0
    %1392 = vmatprep.subr.mxu0 0.0
    %1393 = vmatpush1.xpose.msra.mxu0 0.0
    %1394 = vmatprep.subr.mxu0 0.0
    %1395 = vmatpush1.xpose.msra.mxu0 0.0
    %1396 = vmatprep.subr.mxu0 0.0
    %1397 = vmatpush1.xpose.msra.mxu0 0.0
    %1398 = vmatprep.subr.mxu0 0.0
    %1399 = vmatpush1.xpose.msra.mxu0 0.0
    %1400 = vmatprep.subr.mxu0 0.0
    %1401 = vmatpush1.xpose.msra.mxu0 0.0
    %1402 = vmatprep.subr.mxu0 0.0
    %1403 = vmatpush1.xpose.msra.mxu0 0.0
    %1404 = vmatprep.mubr.f32.mxu0 0.0
    %1405 = vmatmul.mubr.f32.gmra.mrb[0].mxu0 %v1336
    %v1406 = vpop.f32.mrb[0].mxu0
    %v1407 = vadd.f32 %v1333, %v1406
    %v1408 = vpop.f32.mrb[0].mxu0
    %1409 = vdwg.mxu0
    %1411 = vrot.lane.b32.xlu0 %v1010, 121
    %v1412 = vpop.permute.xlu0 %1411
    %v1415 = vsel %vm425, %v386, 0
    %v1417 = vsel %vm425, %v320, 0
    %1419 = vmatprep.subr.mxu0 0.0
    %1420 = vmatpush1.xpose.msra.mxu0 %v1417
    %1421 = vmatprep.subr.mxu0 0.0
    %1422 = vmatpush1.xpose.msra.mxu0 0.0
    %1423 = vmatprep.subr.mxu0 0.0
    %1424 = vmatpush1.xpose.msra.mxu0 0.0
    %1425 = vmatprep.subr.mxu0 0.0
    %1426 = vmatpush1.xpose.msra.mxu0 0.0
    %1427 = vmatprep.subr.mxu0 0.0
    %1428 = vmatpush1.xpose.msra.mxu0 0.0
    %1429 = vmatprep.subr.mxu0 0.0
    %1430 = vmatpush1.xpose.msra.mxu0 0.0
    %1431 = vmatprep.subr.mxu0 0.0
    %1432 = vmatpush1.xpose.msra.mxu0 0.0
    %1433 = vmatprep.subr.mxu0 0.0
    %1434 = vmatpush1.xpose.msra.mxu0 0.0
    %1435 = vmatprep.subr.mxu0 0.0
    %1436 = vmatpush1.xpose.msra.mxu0 0.0
    %1437 = vmatprep.subr.mxu0 0.0
    %1438 = vmatpush1.xpose.msra.mxu0 0.0
    %1439 = vmatprep.subr.mxu0 0.0
    %1440 = vmatpush1.xpose.msra.mxu0 0.0
    %1441 = vmatprep.subr.mxu0 0.0
    %1442 = vmatpush1.xpose.msra.mxu0 0.0
    %1443 = vmatprep.subr.mxu0 0.0
    %1444 = vmatpush1.xpose.msra.mxu0 0.0
    %1445 = vmatprep.subr.mxu0 0.0
    %1446 = vmatpush1.xpose.msra.mxu0 0.0
    %1447 = vmatprep.subr.mxu0 0.0
    %1448 = vmatpush1.xpose.msra.mxu0 0.0
    %1449 = vmatprep.subr.mxu0 0.0
    %1450 = vmatpush1.xpose.msra.mxu0 0.0
    %1451 = vmatprep.subr.mxu0 0.0
    %1452 = vmatpush1.xpose.msra.mxu0 0.0
    %1453 = vmatprep.subr.mxu0 0.0
    %1454 = vmatpush1.xpose.msra.mxu0 0.0
    %1455 = vmatprep.subr.mxu0 0.0
    %1456 = vmatpush1.xpose.msra.mxu0 0.0
    %1457 = vmatprep.subr.mxu0 0.0
    %1458 = vmatpush1.xpose.msra.mxu0 0.0
    %1459 = vmatprep.subr.mxu0 0.0
    %1460 = vmatpush1.xpose.msra.mxu0 0.0
    %1461 = vmatprep.subr.mxu0 0.0
    %1462 = vmatpush1.xpose.msra.mxu0 0.0
    %1463 = vmatprep.subr.mxu0 0.0
    %1464 = vmatpush1.xpose.msra.mxu0 0.0
    %1465 = vmatprep.subr.mxu0 0.0
    %1466 = vmatpush1.xpose.msra.mxu0 0.0
    %1467 = vmatprep.subr.mxu0 0.0
    %1468 = vmatpush1.xpose.msra.mxu0 0.0
    %1469 = vmatprep.subr.mxu0 0.0
    %1470 = vmatpush1.xpose.msra.mxu0 0.0
    %1471 = vmatprep.subr.mxu0 0.0
    %1472 = vmatpush1.xpose.msra.mxu0 0.0
    %1473 = vmatprep.subr.mxu0 0.0
    %1474 = vmatpush1.xpose.msra.mxu0 0.0
    %1475 = vmatprep.subr.mxu0 0.0
    %1476 = vmatpush1.xpose.msra.mxu0 0.0
    %1477 = vmatprep.subr.mxu0 0.0
    %1478 = vmatpush1.xpose.msra.mxu0 0.0
    %1479 = vmatprep.subr.mxu0 0.0
    %1480 = vmatpush1.xpose.msra.mxu0 0.0
    %1481 = vmatprep.subr.mxu0 0.0
    %1482 = vmatpush1.xpose.msra.mxu0 0.0
    %1483 = vmatprep.mubr.f32.mxu0 0.0
    %1484 = vmatmul.mubr.f32.gmra.mrb[0].mxu0 %v1415
    %v1485 = vpop.f32.mrb[0].mxu0
    %v1486 = vadd.f32 %v1412, %v1485
    %v1487 = vpop.f32.mrb[0].mxu0
    %1488 = vdwg.mxu0
    %1490 = vrot.lane.b32.xlu0 %v1011, 121
    %v1491 = vpop.permute.xlu0 %1490
    %v1494 = vsel %vm425, %v387, 0
    %v1496 = vsel %vm425, %v322, 0
    %1498 = vmatprep.subr.mxu0 0.0
    %1499 = vmatpush1.xpose.msra.mxu0 %v1496
    %1500 = vmatprep.subr.mxu0 0.0
    %1501 = vmatpush1.xpose.msra.mxu0 0.0
    %1502 = vmatprep.subr.mxu0 0.0
    %1503 = vmatpush1.xpose.msra.mxu0 0.0
    %1504 = vmatprep.subr.mxu0 0.0
    %1505 = vmatpush1.xpose.msra.mxu0 0.0
    %1506 = vmatprep.subr.mxu0 0.0
    %1507 = vmatpush1.xpose.msra.mxu0 0.0
    %1508 = vmatprep.subr.mxu0 0.0
    %1509 = vmatpush1.xpose.msra.mxu0 0.0
    %1510 = vmatprep.subr.mxu0 0.0
    %1511 = vmatpush1.xpose.msra.mxu0 0.0
    %1512 = vmatprep.subr.mxu0 0.0
    %1513 = vmatpush1.xpose.msra.mxu0 0.0
    %1514 = vmatprep.subr.mxu0 0.0
    %1515 = vmatpush1.xpose.msra.mxu0 0.0
    %1516 = vmatprep.subr.mxu0 0.0
    %1517 = vmatpush1.xpose.msra.mxu0 0.0
    %1518 = vmatprep.subr.mxu0 0.0
    %1519 = vmatpush1.xpose.msra.mxu0 0.0
    %1520 = vmatprep.subr.mxu0 0.0
    %1521 = vmatpush1.xpose.msra.mxu0 0.0
    %1522 = vmatprep.subr.mxu0 0.0
    %1523 = vmatpush1.xpose.msra.mxu0 0.0
    %1524 = vmatprep.subr.mxu0 0.0
    %1525 = vmatpush1.xpose.msra.mxu0 0.0
    %1526 = vmatprep.subr.mxu0 0.0
    %1527 = vmatpush1.xpose.msra.mxu0 0.0
    %1528 = vmatprep.subr.mxu0 0.0
    %1529 = vmatpush1.xpose.msra.mxu0 0.0
    %1530 = vmatprep.subr.mxu0 0.0
    %1531 = vmatpush1.xpose.msra.mxu0 0.0
    %1532 = vmatprep.subr.mxu0 0.0
    %1533 = vmatpush1.xpose.msra.mxu0 0.0
    %1534 = vmatprep.subr.mxu0 0.0
    %1535 = vmatpush1.xpose.msra.mxu0 0.0
    %1536 = vmatprep.subr.mxu0 0.0
    %1537 = vmatpush1.xpose.msra.mxu0 0.0
    %1538 = vmatprep.subr.mxu0 0.0
    %1539 = vmatpush1.xpose.msra.mxu0 0.0
    %1540 = vmatprep.subr.mxu0 0.0
    %1541 = vmatpush1.xpose.msra.mxu0 0.0
    %1542 = vmatprep.subr.mxu0 0.0
    %1543 = vmatpush1.xpose.msra.mxu0 0.0
    %1544 = vmatprep.subr.mxu0 0.0
    %1545 = vmatpush1.xpose.msra.mxu0 0.0
    %1546 = vmatprep.subr.mxu0 0.0
    %1547 = vmatpush1.xpose.msra.mxu0 0.0
    %1548 = vmatprep.subr.mxu0 0.0
    %1549 = vmatpush1.xpose.msra.mxu0 0.0
    %1550 = vmatprep.subr.mxu0 0.0
    %1551 = vmatpush1.xpose.msra.mxu0 0.0
    %1552 = vmatprep.subr.mxu0 0.0
    %1553 = vmatpush1.xpose.msra.mxu0 0.0
    %1554 = vmatprep.subr.mxu0 0.0
    %1555 = vmatpush1.xpose.msra.mxu0 0.0
    %1556 = vmatprep.subr.mxu0 0.0
    %1557 = vmatpush1.xpose.msra.mxu0 0.0
    %1558 = vmatprep.subr.mxu0 0.0
    %1559 = vmatpush1.xpose.msra.mxu0 0.0
    %1560 = vmatprep.subr.mxu0 0.0
    %1561 = vmatpush1.xpose.msra.mxu0 0.0
    %1562 = vmatprep.mubr.f32.mxu0 0.0
    %1563 = vmatmul.mubr.f32.gmra.mrb[0].mxu0 %v1494
    %v1564 = vpop.f32.mrb[0].mxu0
    %v1565 = vadd.f32 %v1491, %v1564
    %v1566 = vpop.f32.mrb[0].mxu0
    %1567 = vdwg.mxu0
    %1569 = vrot.lane.b32.xlu0 %v1012, 121
    %v1570 = vpop.permute.xlu0 %1569
    %v1573 = vsel %vm425, %v388, 0
    %v1575 = vsel %vm425, %v324, 0
    %1577 = vmatprep.subr.mxu0 0.0
    %1578 = vmatpush1.xpose.msra.mxu0 %v1575
    %1579 = vmatprep.subr.mxu0 0.0
    %1580 = vmatpush1.xpose.msra.mxu0 0.0
    %1581 = vmatprep.subr.mxu0 0.0
    %1582 = vmatpush1.xpose.msra.mxu0 0.0
    %1583 = vmatprep.subr.mxu0 0.0
    %1584 = vmatpush1.xpose.msra.mxu0 0.0
    %1585 = vmatprep.subr.mxu0 0.0
    %1586 = vmatpush1.xpose.msra.mxu0 0.0
    %1587 = vmatprep.subr.mxu0 0.0
    %1588 = vmatpush1.xpose.msra.mxu0 0.0
    %1589 = vmatprep.subr.mxu0 0.0
    %1590 = vmatpush1.xpose.msra.mxu0 0.0
    %1591 = vmatprep.subr.mxu0 0.0
    %1592 = vmatpush1.xpose.msra.mxu0 0.0
    %1593 = vmatprep.subr.mxu0 0.0
    %1594 = vmatpush1.xpose.msra.mxu0 0.0
    %1595 = vmatprep.subr.mxu0 0.0
    %1596 = vmatpush1.xpose.msra.mxu0 0.0
    %1597 = vmatprep.subr.mxu0 0.0
    %1598 = vmatpush1.xpose.msra.mxu0 0.0
    %1599 = vmatprep.subr.mxu0 0.0
    %1600 = vmatpush1.xpose.msra.mxu0 0.0
    %1601 = vmatprep.subr.mxu0 0.0
    %1602 = vmatpush1.xpose.msra.mxu0 0.0
    %1603 = vmatprep.subr.mxu0 0.0
    %1604 = vmatpush1.xpose.msra.mxu0 0.0
    %1605 = vmatprep.subr.mxu0 0.0
    %1606 = vmatpush1.xpose.msra.mxu0 0.0
    %1607 = vmatprep.subr.mxu0 0.0
    %1608 = vmatpush1.xpose.msra.mxu0 0.0
    %1609 = vmatprep.subr.mxu0 0.0
    %1610 = vmatpush1.xpose.msra.mxu0 0.0
    %1611 = vmatprep.subr.mxu0 0.0
    %1612 = vmatpush1.xpose.msra.mxu0 0.0
    %1613 = vmatprep.subr.mxu0 0.0
    %1614 = vmatpush1.xpose.msra.mxu0 0.0
    %1615 = vmatprep.subr.mxu0 0.0
    %1616 = vmatpush1.xpose.msra.mxu0 0.0
    %1617 = vmatprep.subr.mxu0 0.0
    %1618 = vmatpush1.xpose.msra.mxu0 0.0
    %1619 = vmatprep.subr.mxu0 0.0
    %1620 = vmatpush1.xpose.msra.mxu0 0.0
    %1621 = vmatprep.subr.mxu0 0.0
    %1622 = vmatpush1.xpose.msra.mxu0 0.0
    %1623 = vmatprep.subr.mxu0 0.0
    %1624 = vmatpush1.xpose.msra.mxu0 0.0
    %1625 = vmatprep.subr.mxu0 0.0
    %1626 = vmatpush1.xpose.msra.mxu0 0.0
    %1627 = vmatprep.subr.mxu0 0.0
    %1628 = vmatpush1.xpose.msra.mxu0 0.0
    %1629 = vmatprep.subr.mxu0 0.0
    %1630 = vmatpush1.xpose.msra.mxu0 0.0
    %1631 = vmatprep.subr.mxu0 0.0
    %1632 = vmatpush1.xpose.msra.mxu0 0.0
    %1633 = vmatprep.subr.mxu0 0.0
    %1634 = vmatpush1.xpose.msra.mxu0 0.0
    %1635 = vmatprep.subr.mxu0 0.0
    %1636 = vmatpush1.xpose.msra.mxu0 0.0
    %1637 = vmatprep.subr.mxu0 0.0
    %1638 = vmatpush1.xpose.msra.mxu0 0.0
    %1639 = vmatprep.subr.mxu0 0.0
    %1640 = vmatpush1.xpose.msra.mxu0 0.0
    %1641 = vmatprep.mubr.f32.mxu0 0.0
    %1642 = vmatmul.mubr.f32.gmra.mrb[0].mxu0 %v1573
    %v1643 = vpop.f32.mrb[0].mxu0
    %v1644 = vadd.f32 %v1570, %v1643
    %v1645 = vpop.f32.mrb[0].mxu0
    %1646 = vdwg.mxu0
    %v1649 = vlaneseq
    %v1650 = vshrl.u32 %v1649, 7
    %v1651 = vsub.s32 0, %v1650
    %v1652 = vrot.slane %v1013, %v1651
    %v1653 = vlaneseq
    %v1654 = vshrl.u32 %v1653, 7
    %v1655 = vsub.s32 0, %v1654
    %v1656 = vrot.slane %v1014, %v1655
    %v1659 = vadd.f32 %v1091, %v1652
    %v1660 = vadd.f32 %v1170, %v1656
    %v1661 = vadd.f32 %v1249, %v1652
    %v1662 = vadd.f32 %v1328, %v1656
    %v1663 = vadd.f32 %v1407, %v1652
    %v1664 = vadd.f32 %v1486, %v1656
    %v1665 = vadd.f32 %v1565, %v1652
    %v1666 = vadd.f32 %v1644, %v1656
    %vm1667 = vcmask 64512
    %v1668 = vsel %vm1667, %v1659, -inf
    %1669 = vmax.xlane.f32.xlu0 %v1668
    %v1670 = vpop.xlane.xlu0 %1669
    %v1671 = vsel %vm1667, %v1660, -inf
    %1672 = vmax.xlane.f32.xlu0 %v1671
    %v1673 = vpop.xlane.xlu0 %1672
    %v1674 = vsel %vm1667, %v1661, -inf
    %1675 = vmax.xlane.f32.xlu0 %v1674
    %v1676 = vpop.xlane.xlu0 %1675
    %v1677 = vsel %vm1667, %v1662, -inf
    %1678 = vmax.xlane.f32.xlu0 %v1677
    %v1679 = vpop.xlane.xlu0 %1678
    %v1680 = vsel %vm1667, %v1663, -inf
    %1681 = vmax.xlane.f32.xlu0 %v1680
    %v1682 = vpop.xlane.xlu0 %1681
    %v1683 = vsel %vm1667, %v1664, -inf
    %1684 = vmax.xlane.f32.xlu0 %v1683
    %v1685 = vpop.xlane.xlu0 %1684
    %v1686 = vsel %vm1667, %v1665, -inf
    %1687 = vmax.xlane.f32.xlu0 %v1686
    %v1688 = vpop.xlane.xlu0 %1687
    %v1689 = vsel %vm1667, %v1666, -inf
    %1690 = vmax.xlane.f32.xlu0 %v1689
    %v1691 = vpop.xlane.xlu0 %1690
    %v1692 = vsub.f32 %v1659, %v1670
    %v1693 = vsub.f32 %v1660, %v1673
    %v1694 = vsub.f32 %v1661, %v1676
    %v1695 = vsub.f32 %v1662, %v1679
    %v1696 = vsub.f32 %v1663, %v1682
    %v1697 = vsub.f32 %v1664, %v1685
    %v1698 = vsub.f32 %v1665, %v1688
    %v1699 = vsub.f32 %v1666, %v1691
    %v1700 = vmul.f32 %v1692, 1.442695
    %v1701 = vpow.pop %v1700
    %v1702 = vmul.f32 %v1693, 1.442695
    %v1703 = vpow.pop %v1702
    %v1704 = vmul.f32 %v1694, 1.442695
    %v1705 = vpow.pop %v1704
    %v1706 = vmul.f32 %v1695, 1.442695
    %v1707 = vpow.pop %v1706
    %v1708 = vmul.f32 %v1696, 1.442695
    %v1709 = vpow.pop %v1708
    %v1710 = vmul.f32 %v1697, 1.442695
    %v1711 = vpow.pop %v1710
    %v1712 = vmul.f32 %v1698, 1.442695
    %v1713 = vpow.pop %v1712
    %v1714 = vmul.f32 %v1699, 1.442695
    %v1715 = vpow.pop %v1714
    %v1716 = vsel %vm1667, %v1701, 0.0
    %1717 = vadd.xlane.f32.xlu0 %v1716
    %v1718 = vpop.xlane.xlu0 %1717
    %v1719 = vsel %vm1667, %v1703, 0.0
    %1720 = vadd.xlane.f32.xlu0 %v1719
    %v1721 = vpop.xlane.xlu0 %1720
    %v1722 = vsel %vm1667, %v1705, 0.0
    %1723 = vadd.xlane.f32.xlu0 %v1722
    %v1724 = vpop.xlane.xlu0 %1723
    %v1725 = vsel %vm1667, %v1707, 0.0
    %1726 = vadd.xlane.f32.xlu0 %v1725
    %v1727 = vpop.xlane.xlu0 %1726
    %v1728 = vsel %vm1667, %v1709, 0.0
    %1729 = vadd.xlane.f32.xlu0 %v1728
    %v1730 = vpop.xlane.xlu0 %1729
    %v1731 = vsel %vm1667, %v1711, 0.0
    %1732 = vadd.xlane.f32.xlu0 %v1731
    %v1733 = vpop.xlane.xlu0 %1732
    %v1734 = vsel %vm1667, %v1713, 0.0
    %1735 = vadd.xlane.f32.xlu0 %v1734
    %v1736 = vpop.xlane.xlu0 %1735
    %v1737 = vsel %vm1667, %v1715, 0.0
    %1738 = vadd.xlane.f32.xlu0 %v1737
    %v1739 = vpop.xlane.xlu0 %1738
    %v1740 = vrcp.pop %v1718
    %v1741 = vrcp.pop %v1721
    %v1742 = vrcp.pop %v1724
    %v1743 = vrcp.pop %v1727
    %v1744 = vrcp.pop %v1730
    %v1745 = vrcp.pop %v1733
    %v1746 = vrcp.pop %v1736
    %v1747 = vrcp.pop %v1739
    %v1748 = vmul.f32 %v1701, %v1740
    %v1749 = vmul.f32 %v1703, %v1741
    %v1750 = vmul.f32 %v1705, %v1742
    %v1751 = vmul.f32 %v1707, %v1743
    %v1752 = vmul.f32 %v1709, %v1744
    %v1753 = vmul.f32 %v1711, %v1745
    %v1754 = vmul.f32 %v1713, %v1746
    %v1755 = vmul.f32 %v1715, %v1747
    %v1757 = vsel %vm1667, %v1748, 0
    %1759 = vmatprep.subr.mxu0 0.0
    %1760 = vmatpush1.msra.mxu0 %v283
    %1761 = vmatprep.subr.mxu0 0.0
    %1762 = vmatpush1.msra.mxu0 0.0
    %1763 = vmatprep.subr.mxu0 0.0
    %1764 = vmatpush1.msra.mxu0 0.0
    %1765 = vmatprep.subr.mxu0 0.0
    %1766 = vmatpush1.msra.mxu0 0.0
    %1767 = vmatprep.subr.mxu0 0.0
    %1768 = vmatpush1.msra.mxu0 0.0
    %1769 = vmatprep.subr.mxu0 0.0
    %1770 = vmatpush1.msra.mxu0 0.0
    %1771 = vmatprep.subr.mxu0 0.0
    %1772 = vmatpush1.msra.mxu0 0.0
    %1773 = vmatprep.subr.mxu0 0.0
    %1774 = vmatpush1.msra.mxu0 0.0
    %1775 = vmatprep.subr.mxu0 0.0
    %1776 = vmatpush1.msra.mxu0 0.0
    %1777 = vmatprep.subr.mxu0 0.0
    %1778 = vmatpush1.msra.mxu0 0.0
    %1779 = vmatprep.subr.mxu0 0.0
    %1780 = vmatpush1.msra.mxu0 0.0
    %1781 = vmatprep.subr.mxu0 0.0
    %1782 = vmatpush1.msra.mxu0 0.0
    %1783 = vmatprep.subr.mxu0 0.0
    %1784 = vmatpush1.msra.mxu0 0.0
    %1785 = vmatprep.subr.mxu0 0.0
    %1786 = vmatpush1.msra.mxu0 0.0
    %1787 = vmatprep.subr.mxu0 0.0
    %1788 = vmatpush1.msra.mxu0 0.0
    %1789 = vmatprep.subr.mxu0 0.0
    %1790 = vmatpush1.msra.mxu0 0.0
    %1791 = vmatprep.subr.mxu0 0.0
    %1792 = vmatpush1.msra.mxu0 0.0
    %1793 = vmatprep.subr.mxu0 0.0
    %1794 = vmatpush1.msra.mxu0 0.0
    %1795 = vmatprep.subr.mxu0 0.0
    %1796 = vmatpush1.msra.mxu0 0.0
    %1797 = vmatprep.subr.mxu0 0.0
    %1798 = vmatpush1.msra.mxu0 0.0
    %1799 = vmatprep.subr.mxu0 0.0
    %1800 = vmatpush1.msra.mxu0 0.0
    %1801 = vmatprep.subr.mxu0 0.0
    %1802 = vmatpush1.msra.mxu0 0.0
    %1803 = vmatprep.subr.mxu0 0.0
    %1804 = vmatpush1.msra.mxu0 0.0
    %1805 = vmatprep.subr.mxu0 0.0
    %1806 = vmatpush1.msra.mxu0 0.0
    %1807 = vmatprep.subr.mxu0 0.0
    %1808 = vmatpush1.msra.mxu0 0.0
    %1809 = vmatprep.subr.mxu0 0.0
    %1810 = vmatpush1.msra.mxu0 0.0
    %1811 = vmatprep.subr.mxu0 0.0
    %1812 = vmatpush1.msra.mxu0 0.0
    %1813 = vmatprep.subr.mxu0 0.0
    %1814 = vmatpush1.msra.mxu0 0.0
    %1815 = vmatprep.subr.mxu0 0.0
    %1816 = vmatpush1.msra.mxu0 0.0
    %1817 = vmatprep.subr.mxu0 0.0
    %1818 = vmatpush1.msra.mxu0 0.0
    %1819 = vmatprep.subr.mxu0 0.0
    %1820 = vmatpush1.msra.mxu0 0.0
    %1821 = vmatprep.subr.mxu0 0.0
    %1822 = vmatpush1.msra.mxu0 0.0
    %1823 = vmatprep.mubr.f32.mxu0 0.0
    %1824 = vmatmul.mubr.f32.gmra.mrb[0].mxu0 %v1757
    %v1825 = vpop.f32.mrb[0].mxu0
    %v1826 = vadd.f32 0.0, %v1825
    %v1827 = vpop.f32.mrb[0].mxu0
    %1828 = vdwg.mxu0
    %v1830 = vsel %vm1667, %v1749, 0
    %1832 = vmatprep.subr.mxu0 0.0
    %1833 = vmatpush1.msra.mxu0 %v288
    %1834 = vmatprep.subr.mxu0 0.0
    %1835 = vmatpush1.msra.mxu0 0.0
    %1836 = vmatprep.subr.mxu0 0.0
    %1837 = vmatpush1.msra.mxu0 0.0
    %1838 = vmatprep.subr.mxu0 0.0
    %1839 = vmatpush1.msra.mxu0 0.0
    %1840 = vmatprep.subr.mxu0 0.0
    %1841 = vmatpush1.msra.mxu0 0.0
    %1842 = vmatprep.subr.mxu0 0.0
    %1843 = vmatpush1.msra.mxu0 0.0
    %1844 = vmatprep.subr.mxu0 0.0
    %1845 = vmatpush1.msra.mxu0 0.0
    %1846 = vmatprep.subr.mxu0 0.0
    %1847 = vmatpush1.msra.mxu0 0.0
    %1848 = vmatprep.subr.mxu0 0.0
    %1849 = vmatpush1.msra.mxu0 0.0
    %1850 = vmatprep.subr.mxu0 0.0
    %1851 = vmatpush1.msra.mxu0 0.0
    %1852 = vmatprep.subr.mxu0 0.0
    %1853 = vmatpush1.msra.mxu0 0.0
    %1854 = vmatprep.subr.mxu0 0.0
    %1855 = vmatpush1.msra.mxu0 0.0
    %1856 = vmatprep.subr.mxu0 0.0
    %1857 = vmatpush1.msra.mxu0 0.0
    %1858 = vmatprep.subr.mxu0 0.0
    %1859 = vmatpush1.msra.mxu0 0.0
    %1860 = vmatprep.subr.mxu0 0.0
    %1861 = vmatpush1.msra.mxu0 0.0
    %1862 = vmatprep.subr.mxu0 0.0
    %1863 = vmatpush1.msra.mxu0 0.0
    %1864 = vmatprep.subr.mxu0 0.0
    %1865 = vmatpush1.msra.mxu0 0.0
    %1866 = vmatprep.subr.mxu0 0.0
    %1867 = vmatpush1.msra.mxu0 0.0
    %1868 = vmatprep.subr.mxu0 0.0
    %1869 = vmatpush1.msra.mxu0 0.0
    %1870 = vmatprep.subr.mxu0 0.0
    %1871 = vmatpush1.msra.mxu0 0.0
    %1872 = vmatprep.subr.mxu0 0.0
    %1873 = vmatpush1.msra.mxu0 0.0
    %1874 = vmatprep.subr.mxu0 0.0
    %1875 = vmatpush1.msra.mxu0 0.0
    %1876 = vmatprep.subr.mxu0 0.0
    %1877 = vmatpush1.msra.mxu0 0.0
    %1878 = vmatprep.subr.mxu0 0.0
    %1879 = vmatpush1.msra.mxu0 0.0
    %1880 = vmatprep.subr.mxu0 0.0
    %1881 = vmatpush1.msra.mxu0 0.0
    %1882 = vmatprep.subr.mxu0 0.0
    %1883 = vmatpush1.msra.mxu0 0.0
    %1884 = vmatprep.subr.mxu0 0.0
    %1885 = vmatpush1.msra.mxu0 0.0
    %1886 = vmatprep.subr.mxu0 0.0
    %1887 = vmatpush1.msra.mxu0 0.0
    %1888 = vmatprep.subr.mxu0 0.0
    %1889 = vmatpush1.msra.mxu0 0.0
    %1890 = vmatprep.subr.mxu0 0.0
    %1891 = vmatpush1.msra.mxu0 0.0
    %1892 = vmatprep.subr.mxu0 0.0
    %1893 = vmatpush1.msra.mxu0 0.0
    %1894 = vmatprep.subr.mxu0 0.0
    %1895 = vmatpush1.msra.mxu0 0.0
    %1896 = vmatprep.mubr.f32.mxu0 0.0
    %1897 = vmatmul.mubr.f32.gmra.mrb[0].mxu0 %v1830
    %v1898 = vpop.f32.mrb[0].mxu0
    %v1899 = vadd.f32 0.0, %v1898
    %v1900 = vpop.f32.mrb[0].mxu0
    %1901 = vdwg.mxu0
    %v1903 = vsel %vm1667, %v1750, 0
    %1905 = vmatprep.subr.mxu0 0.0
    %1906 = vmatpush1.msra.mxu0 %v328
    %1907 = vmatprep.subr.mxu0 0.0
    %1908 = vmatpush1.msra.mxu0 0.0
    %1909 = vmatprep.subr.mxu0 0.0
    %1910 = vmatpush1.msra.mxu0 0.0
    %1911 = vmatprep.subr.mxu0 0.0
    %1912 = vmatpush1.msra.mxu0 0.0
    %1913 = vmatprep.subr.mxu0 0.0
    %1914 = vmatpush1.msra.mxu0 0.0
    %1915 = vmatprep.subr.mxu0 0.0
    %1916 = vmatpush1.msra.mxu0 0.0
    %1917 = vmatprep.subr.mxu0 0.0
    %1918 = vmatpush1.msra.mxu0 0.0
    %1919 = vmatprep.subr.mxu0 0.0
    %1920 = vmatpush1.msra.mxu0 0.0
    %1921 = vmatprep.subr.mxu0 0.0
    %1922 = vmatpush1.msra.mxu0 0.0
    %1923 = vmatprep.subr.mxu0 0.0
    %1924 = vmatpush1.msra.mxu0 0.0
    %1925 = vmatprep.subr.mxu0 0.0
    %1926 = vmatpush1.msra.mxu0 0.0
    %1927 = vmatprep.subr.mxu0 0.0
    %1928 = vmatpush1.msra.mxu0 0.0
    %1929 = vmatprep.subr.mxu0 0.0
    %1930 = vmatpush1.msra.mxu0 0.0
    %1931 = vmatprep.subr.mxu0 0.0
    %1932 = vmatpush1.msra.mxu0 0.0
    %1933 = vmatprep.subr.mxu0 0.0
    %1934 = vmatpush1.msra.mxu0 0.0
    %1935 = vmatprep.subr.mxu0 0.0
    %1936 = vmatpush1.msra.mxu0 0.0
    %1937 = vmatprep.subr.mxu0 0.0
    %1938 = vmatpush1.msra.mxu0 0.0
    %1939 = vmatprep.subr.mxu0 0.0
    %1940 = vmatpush1.msra.mxu0 0.0
    %1941 = vmatprep.subr.mxu0 0.0
    %1942 = vmatpush1.msra.mxu0 0.0
    %1943 = vmatprep.subr.mxu0 0.0
    %1944 = vmatpush1.msra.mxu0 0.0
    %1945 = vmatprep.subr.mxu0 0.0
    %1946 = vmatpush1.msra.mxu0 0.0
    %1947 = vmatprep.subr.mxu0 0.0
    %1948 = vmatpush1.msra.mxu0 0.0
    %1949 = vmatprep.subr.mxu0 0.0
    %1950 = vmatpush1.msra.mxu0 0.0
    %1951 = vmatprep.subr.mxu0 0.0
    %1952 = vmatpush1.msra.mxu0 0.0
    %1953 = vmatprep.subr.mxu0 0.0
    %1954 = vmatpush1.msra.mxu0 0.0
    %1955 = vmatprep.subr.mxu0 0.0
    %1956 = vmatpush1.msra.mxu0 0.0
    %1957 = vmatprep.subr.mxu0 0.0
    %1958 = vmatpush1.msra.mxu0 0.0
    %1959 = vmatprep.subr.mxu0 0.0
    %1960 = vmatpush1.msra.mxu0 0.0
    %1961 = vmatprep.subr.mxu0 0.0
    %1962 = vmatpush1.msra.mxu0 0.0
    %1963 = vmatprep.subr.mxu0 0.0
    %1964 = vmatpush1.msra.mxu0 0.0
    %1965 = vmatprep.subr.mxu0 0.0
    %1966 = vmatpush1.msra.mxu0 0.0
    %1967 = vmatprep.subr.mxu0 0.0
    %1968 = vmatpush1.msra.mxu0 0.0
    %1969 = vmatprep.mubr.f32.mxu0 0.0
    %1970 = vmatmul.mubr.f32.gmra.mrb[0].mxu0 %v1903
    %v1971 = vpop.f32.mrb[0].mxu0
    %v1972 = vadd.f32 0.0, %v1971
    %v1973 = vpop.f32.mrb[0].mxu0
    %1974 = vdwg.mxu0
    %v1976 = vsel %vm1667, %v1751, 0
    %1978 = vmatprep.subr.mxu0 0.0
    %1979 = vmatpush1.msra.mxu0 %v330
    %1980 = vmatprep.subr.mxu0 0.0
    %1981 = vmatpush1.msra.mxu0 0.0
    %1982 = vmatprep.subr.mxu0 0.0
    %1983 = vmatpush1.msra.mxu0 0.0
    %1984 = vmatprep.subr.mxu0 0.0
    %1985 = vmatpush1.msra.mxu0 0.0
    %1986 = vmatprep.subr.mxu0 0.0
    %1987 = vmatpush1.msra.mxu0 0.0
    %1988 = vmatprep.subr.mxu0 0.0
    %1989 = vmatpush1.msra.mxu0 0.0
    %1990 = vmatprep.subr.mxu0 0.0
    %1991 = vmatpush1.msra.mxu0 0.0
    %1992 = vmatprep.subr.mxu0 0.0
    %1993 = vmatpush1.msra.mxu0 0.0
    %1994 = vmatprep.subr.mxu0 0.0
    %1995 = vmatpush1.msra.mxu0 0.0
    %1996 = vmatprep.subr.mxu0 0.0
    %1997 = vmatpush1.msra.mxu0 0.0
    %1998 = vmatprep.subr.mxu0 0.0
    %1999 = vmatpush1.msra.mxu0 0.0
    %2000 = vmatprep.subr.mxu0 0.0
    %2001 = vmatpush1.msra.mxu0 0.0
    %2002 = vmatprep.subr.mxu0 0.0
    %2003 = vmatpush1.msra.mxu0 0.0
    %2004 = vmatprep.subr.mxu0 0.0
    %2005 = vmatpush1.msra.mxu0 0.0
    %2006 = vmatprep.subr.mxu0 0.0
    %2007 = vmatpush1.msra.mxu0 0.0
    %2008 = vmatprep.subr.mxu0 0.0
    %2009 = vmatpush1.msra.mxu0 0.0
    %2010 = vmatprep.subr.mxu0 0.0
    %2011 = vmatpush1.msra.mxu0 0.0
    %2012 = vmatprep.subr.mxu0 0.0
    %2013 = vmatpush1.msra.mxu0 0.0
    %2014 = vmatprep.subr.mxu0 0.0
    %2015 = vmatpush1.msra.mxu0 0.0
    %2016 = vmatprep.subr.mxu0 0.0
    %2017 = vmatpush1.msra.mxu0 0.0
    %2018 = vmatprep.subr.mxu0 0.0
    %2019 = vmatpush1.msra.mxu0 0.0
    %2020 = vmatprep.subr.mxu0 0.0
    %2021 = vmatpush1.msra.mxu0 0.0
    %2022 = vmatprep.subr.mxu0 0.0
    %2023 = vmatpush1.msra.mxu0 0.0
    %2024 = vmatprep.subr.mxu0 0.0
    %2025 = vmatpush1.msra.mxu0 0.0
    %2026 = vmatprep.subr.mxu0 0.0
    %2027 = vmatpush1.msra.mxu0 0.0
    %2028 = vmatprep.subr.mxu0 0.0
    %2029 = vmatpush1.msra.mxu0 0.0
    %2030 = vmatprep.subr.mxu0 0.0
    %2031 = vmatpush1.msra.mxu0 0.0
    %2032 = vmatprep.subr.mxu0 0.0
    %2033 = vmatpush1.msra.mxu0 0.0
    %2034 = vmatprep.subr.mxu0 0.0
    %2035 = vmatpush1.msra.mxu0 0.0
    %2036 = vmatprep.subr.mxu0 0.0
    %2037 = vmatpush1.msra.mxu0 0.0
    %2038 = vmatprep.subr.mxu0 0.0
    %2039 = vmatpush1.msra.mxu0 0.0
    %2040 = vmatprep.subr.mxu0 0.0
    %2041 = vmatpush1.msra.mxu0 0.0
    %2042 = vmatprep.mubr.f32.mxu0 0.0
    %2043 = vmatmul.mubr.f32.gmra.mrb[0].mxu0 %v1976
    %v2044 = vpop.f32.mrb[0].mxu0
    %v2045 = vadd.f32 0.0, %v2044
    %v2046 = vpop.f32.mrb[0].mxu0
    %2047 = vdwg.mxu0
    %v2049 = vsel %vm1667, %v1752, 0
    %2051 = vmatprep.subr.mxu0 0.0
    %2052 = vmatpush1.msra.mxu0 %v334
    %2053 = vmatprep.subr.mxu0 0.0
    %2054 = vmatpush1.msra.mxu0 0.0
    %2055 = vmatprep.subr.mxu0 0.0
    %2056 = vmatpush1.msra.mxu0 0.0
    %2057 = vmatprep.subr.mxu0 0.0
    %2058 = vmatpush1.msra.mxu0 0.0
    %2059 = vmatprep.subr.mxu0 0.0
    %2060 = vmatpush1.msra.mxu0 0.0
    %2061 = vmatprep.subr.mxu0 0.0
    %2062 = vmatpush1.msra.mxu0 0.0
    %2063 = vmatprep.subr.mxu0 0.0
    %2064 = vmatpush1.msra.mxu0 0.0
    %2065 = vmatprep.subr.mxu0 0.0
    %2066 = vmatpush1.msra.mxu0 0.0
    %2067 = vmatprep.subr.mxu0 0.0
    %2068 = vmatpush1.msra.mxu0 0.0
    %2069 = vmatprep.subr.mxu0 0.0
    %2070 = vmatpush1.msra.mxu0 0.0
    %2071 = vmatprep.subr.mxu0 0.0
    %2072 = vmatpush1.msra.mxu0 0.0
    %2073 = vmatprep.subr.mxu0 0.0
    %2074 = vmatpush1.msra.mxu0 0.0
    %2075 = vmatprep.subr.mxu0 0.0
    %2076 = vmatpush1.msra.mxu0 0.0
    %2077 = vmatprep.subr.mxu0 0.0
    %2078 = vmatpush1.msra.mxu0 0.0
    %2079 = vmatprep.subr.mxu0 0.0
    %2080 = vmatpush1.msra.mxu0 0.0
    %2081 = vmatprep.subr.mxu0 0.0
    %2082 = vmatpush1.msra.mxu0 0.0
    %2083 = vmatprep.subr.mxu0 0.0
    %2084 = vmatpush1.msra.mxu0 0.0
    %2085 = vmatprep.subr.mxu0 0.0
    %2086 = vmatpush1.msra.mxu0 0.0
    %2087 = vmatprep.subr.mxu0 0.0
    %2088 = vmatpush1.msra.mxu0 0.0
    %2089 = vmatprep.subr.mxu0 0.0
    %2090 = vmatpush1.msra.mxu0 0.0
    %2091 = vmatprep.subr.mxu0 0.0
    %2092 = vmatpush1.msra.mxu0 0.0
    %2093 = vmatprep.subr.mxu0 0.0
    %2094 = vmatpush1.msra.mxu0 0.0
    %2095 = vmatprep.subr.mxu0 0.0
    %2096 = vmatpush1.msra.mxu0 0.0
    %2097 = vmatprep.subr.mxu0 0.0
    %2098 = vmatpush1.msra.mxu0 0.0
    %2099 = vmatprep.subr.mxu0 0.0
    %2100 = vmatpush1.msra.mxu0 0.0
    %2101 = vmatprep.subr.mxu0 0.0
    %2102 = vmatpush1.msra.mxu0 0.0
    %2103 = vmatprep.subr.mxu0 0.0
    %2104 = vmatpush1.msra.mxu0 0.0
    %2105 = vmatprep.subr.mxu0 0.0
    %2106 = vmatpush1.msra.mxu0 0.0
    %2107 = vmatprep.subr.mxu0 0.0
    %2108 = vmatpush1.msra.mxu0 0.0
    %2109 = vmatprep.subr.mxu0 0.0
    %2110 = vmatpush1.msra.mxu0 0.0
    %2111 = vmatprep.subr.mxu0 0.0
    %2112 = vmatpush1.msra.mxu0 0.0
    %2113 = vmatprep.subr.mxu0 0.0
    %2114 = vmatpush1.msra.mxu0 0.0
    %2115 = vmatprep.mubr.f32.mxu0 0.0
    %2116 = vmatmul.mubr.f32.gmra.mrb[0].mxu0 %v2049
    %v2117 = vpop.f32.mrb[0].mxu0
    %v2118 = vadd.f32 0.0, %v2117
    %v2119 = vpop.f32.mrb[0].mxu0
    %2120 = vdwg.mxu0
    %v2122 = vsel %vm1667, %v1753, 0
    %2124 = vmatprep.subr.mxu0 0.0
    %2125 = vmatpush1.msra.mxu0 %v336
    %2126 = vmatprep.subr.mxu0 0.0
    %2127 = vmatpush1.msra.mxu0 0.0
    %2128 = vmatprep.subr.mxu0 0.0
    %2129 = vmatpush1.msra.mxu0 0.0
    %2130 = vmatprep.subr.mxu0 0.0
    %2131 = vmatpush1.msra.mxu0 0.0
    %2132 = vmatprep.subr.mxu0 0.0
    %2133 = vmatpush1.msra.mxu0 0.0
    %2134 = vmatprep.subr.mxu0 0.0
    %2135 = vmatpush1.msra.mxu0 0.0
    %2136 = vmatprep.subr.mxu0 0.0
    %2137 = vmatpush1.msra.mxu0 0.0
    %2138 = vmatprep.subr.mxu0 0.0
    %2139 = vmatpush1.msra.mxu0 0.0
    %2140 = vmatprep.subr.mxu0 0.0
    %2141 = vmatpush1.msra.mxu0 0.0
    %2142 = vmatprep.subr.mxu0 0.0
    %2143 = vmatpush1.msra.mxu0 0.0
    %2144 = vmatprep.subr.mxu0 0.0
    %2145 = vmatpush1.msra.mxu0 0.0
    %2146 = vmatprep.subr.mxu0 0.0
    %2147 = vmatpush1.msra.mxu0 0.0
    %2148 = vmatprep.subr.mxu0 0.0
    %2149 = vmatpush1.msra.mxu0 0.0
    %2150 = vmatprep.subr.mxu0 0.0
    %2151 = vmatpush1.msra.mxu0 0.0
    %2152 = vmatprep.subr.mxu0 0.0
    %2153 = vmatpush1.msra.mxu0 0.0
    %2154 = vmatprep.subr.mxu0 0.0
    %2155 = vmatpush1.msra.mxu0 0.0
    %2156 = vmatprep.subr.mxu0 0.0
    %2157 = vmatpush1.msra.mxu0 0.0
    %2158 = vmatprep.subr.mxu0 0.0
    %2159 = vmatpush1.msra.mxu0 0.0
    %2160 = vmatprep.subr.mxu0 0.0
    %2161 = vmatpush1.msra.mxu0 0.0
    %2162 = vmatprep.subr.mxu0 0.0
    %2163 = vmatpush1.msra.mxu0 0.0
    %2164 = vmatprep.subr.mxu0 0.0
    %2165 = vmatpush1.msra.mxu0 0.0
    %2166 = vmatprep.subr.mxu0 0.0
    %2167 = vmatpush1.msra.mxu0 0.0
    %2168 = vmatprep.subr.mxu0 0.0
    %2169 = vmatpush1.msra.mxu0 0.0
    %2170 = vmatprep.subr.mxu0 0.0
    %2171 = vmatpush1.msra.mxu0 0.0
    %2172 = vmatprep.subr.mxu0 0.0
    %2173 = vmatpush1.msra.mxu0 0.0
    %2174 = vmatprep.subr.mxu0 0.0
    %2175 = vmatpush1.msra.mxu0 0.0
    %2176 = vmatprep.subr.mxu0 0.0
    %2177 = vmatpush1.msra.mxu0 0.0
    %2178 = vmatprep.subr.mxu0 0.0
    %2179 = vmatpush1.msra.mxu0 0.0
    %2180 = vmatprep.subr.mxu0 0.0
    %2181 = vmatpush1.msra.mxu0 0.0
    %2182 = vmatprep.subr.mxu0 0.0
    %2183 = vmatpush1.msra.mxu0 0.0
    %2184 = vmatprep.subr.mxu0 0.0
    %2185 = vmatpush1.msra.mxu0 0.0
    %2186 = vmatprep.subr.mxu0 0.0
    %2187 = vmatpush1.msra.mxu0 0.0
    %2188 = vmatprep.mubr.f32.mxu0 0.0
    %2189 = vmatmul.mubr.f32.gmra.mrb[0].mxu0 %v2122
    %v2190 = vpop.f32.mrb[0].mxu0
    %v2191 = vadd.f32 0.0, %v2190
    %v2192 = vpop.f32.mrb[0].mxu0
    %2193 = vdwg.mxu0
    %v2195 = vsel %vm1667, %v1754, 0
    %2197 = vmatprep.subr.mxu0 0.0
    %2198 = vmatpush1.msra.mxu0 %v340
    %2199 = vmatprep.subr.mxu0 0.0
    %2200 = vmatpush1.msra.mxu0 0.0
    %2201 = vmatprep.subr.mxu0 0.0
    %2202 = vmatpush1.msra.mxu0 0.0
    %2203 = vmatprep.subr.mxu0 0.0
    %2204 = vmatpush1.msra.mxu0 0.0
    %2205 = vmatprep.subr.mxu0 0.0
    %2206 = vmatpush1.msra.mxu0 0.0
    %2207 = vmatprep.subr.mxu0 0.0
    %2208 = vmatpush1.msra.mxu0 0.0
    %2209 = vmatprep.subr.mxu0 0.0
    %2210 = vmatpush1.msra.mxu0 0.0
    %2211 = vmatprep.subr.mxu0 0.0
    %2212 = vmatpush1.msra.mxu0 0.0
    %2213 = vmatprep.subr.mxu0 0.0
    %2214 = vmatpush1.msra.mxu0 0.0
    %2215 = vmatprep.subr.mxu0 0.0
    %2216 = vmatpush1.msra.mxu0 0.0
    %2217 = vmatprep.subr.mxu0 0.0
    %2218 = vmatpush1.msra.mxu0 0.0
    %2219 = vmatprep.subr.mxu0 0.0
    %2220 = vmatpush1.msra.mxu0 0.0
    %2221 = vmatprep.subr.mxu0 0.0
    %2222 = vmatpush1.msra.mxu0 0.0
    %2223 = vmatprep.subr.mxu0 0.0
    %2224 = vmatpush1.msra.mxu0 0.0
    %2225 = vmatprep.subr.mxu0 0.0
    %2226 = vmatpush1.msra.mxu0 0.0
    %2227 = vmatprep.subr.mxu0 0.0
    %2228 = vmatpush1.msra.mxu0 0.0
    %2229 = vmatprep.subr.mxu0 0.0
    %2230 = vmatpush1.msra.mxu0 0.0
    %2231 = vmatprep.subr.mxu0 0.0
    %2232 = vmatpush1.msra.mxu0 0.0
    %2233 = vmatprep.subr.mxu0 0.0
    %2234 = vmatpush1.msra.mxu0 0.0
    %2235 = vmatprep.subr.mxu0 0.0
    %2236 = vmatpush1.msra.mxu0 0.0
    %2237 = vmatprep.subr.mxu0 0.0
    %2238 = vmatpush1.msra.mxu0 0.0
    %2239 = vmatprep.subr.mxu0 0.0
    %2240 = vmatpush1.msra.mxu0 0.0
    %2241 = vmatprep.subr.mxu0 0.0
    %2242 = vmatpush1.msra.mxu0 0.0
    %2243 = vmatprep.subr.mxu0 0.0
    %2244 = vmatpush1.msra.mxu0 0.0
    %2245 = vmatprep.subr.mxu0 0.0
    %2246 = vmatpush1.msra.mxu0 0.0
    %2247 = vmatprep.subr.mxu0 0.0
    %2248 = vmatpush1.msra.mxu0 0.0
    %2249 = vmatprep.subr.mxu0 0.0
    %2250 = vmatpush1.msra.mxu0 0.0
    %2251 = vmatprep.subr.mxu0 0.0
    %2252 = vmatpush1.msra.mxu0 0.0
    %2253 = vmatprep.subr.mxu0 0.0
    %2254 = vmatpush1.msra.mxu0 0.0
    %2255 = vmatprep.subr.mxu0 0.0
    %2256 = vmatpush1.msra.mxu0 0.0
    %2257 = vmatprep.subr.mxu0 0.0
    %2258 = vmatpush1.msra.mxu0 0.0
    %2259 = vmatprep.subr.mxu0 0.0
    %2260 = vmatpush1.msra.mxu0 0.0
    %2261 = vmatprep.mubr.f32.mxu0 0.0
    %2262 = vmatmul.mubr.f32.gmra.mrb[0].mxu0 %v2195
    %v2263 = vpop.f32.mrb[0].mxu0
    %v2264 = vadd.f32 0.0, %v2263
    %v2265 = vpop.f32.mrb[0].mxu0
    %2266 = vdwg.mxu0
    %v2268 = vsel %vm1667, %v1755, 0
    %2270 = vmatprep.subr.mxu0 0.0
    %2271 = vmatpush1.msra.mxu0 %v342
    %2272 = vmatprep.subr.mxu0 0.0
    %2273 = vmatpush1.msra.mxu0 0.0
    %2274 = vmatprep.subr.mxu0 0.0
    %2275 = vmatpush1.msra.mxu0 0.0
    %2276 = vmatprep.subr.mxu0 0.0
    %2277 = vmatpush1.msra.mxu0 0.0
    %2278 = vmatprep.subr.mxu0 0.0
    %2279 = vmatpush1.msra.mxu0 0.0
    %2280 = vmatprep.subr.mxu0 0.0
    %2281 = vmatpush1.msra.mxu0 0.0
    %2282 = vmatprep.subr.mxu0 0.0
    %2283 = vmatpush1.msra.mxu0 0.0
    %2284 = vmatprep.subr.mxu0 0.0
    %2285 = vmatpush1.msra.mxu0 0.0
    %2286 = vmatprep.subr.mxu0 0.0
    %2287 = vmatpush1.msra.mxu0 0.0
    %2288 = vmatprep.subr.mxu0 0.0
    %2289 = vmatpush1.msra.mxu0 0.0
    %2290 = vmatprep.subr.mxu0 0.0
    %2291 = vmatpush1.msra.mxu0 0.0
    %2292 = vmatprep.subr.mxu0 0.0
    %2293 = vmatpush1.msra.mxu0 0.0
    %2294 = vmatprep.subr.mxu0 0.0
    %2295 = vmatpush1.msra.mxu0 0.0
    %2296 = vmatprep.subr.mxu0 0.0
    %2297 = vmatpush1.msra.mxu0 0.0
    %2298 = vmatprep.subr.mxu0 0.0
    %2299 = vmatpush1.msra.mxu0 0.0
    %2300 = vmatprep.subr.mxu0 0.0
    %2301 = vmatpush1.msra.mxu0 0.0
    %2302 = vmatprep.subr.mxu0 0.0
    %2303 = vmatpush1.msra.mxu0 0.0
    %2304 = vmatprep.subr.mxu0 0.0
    %2305 = vmatpush1.msra.mxu0 0.0
    %2306 = vmatprep.subr.mxu0 0.0
    %2307 = vmatpush1.msra.mxu0 0.0
    %2308 = vmatprep.subr.mxu0 0.0
    %2309 = vmatpush1.msra.mxu0 0.0
    %2310 = vmatprep.subr.mxu0 0.0
    %2311 = vmatpush1.msra.mxu0 0.0
    %2312 = vmatprep.subr.mxu0 0.0
    %2313 = vmatpush1.msra.mxu0 0.0
    %2314 = vmatprep.subr.mxu0 0.0
    %2315 = vmatpush1.msra.mxu0 0.0
    %2316 = vmatprep.subr.mxu0 0.0
    %2317 = vmatpush1.msra.mxu0 0.0
    %2318 = vmatprep.subr.mxu0 0.0
    %2319 = vmatpush1.msra.mxu0 0.0
    %2320 = vmatprep.subr.mxu0 0.0
    %2321 = vmatpush1.msra.mxu0 0.0
    %2322 = vmatprep.subr.mxu0 0.0
    %2323 = vmatpush1.msra.mxu0 0.0
    %2324 = vmatprep.subr.mxu0 0.0
    %2325 = vmatpush1.msra.mxu0 0.0
    %2326 = vmatprep.subr.mxu0 0.0
    %2327 = vmatpush1.msra.mxu0 0.0
    %2328 = vmatprep.subr.mxu0 0.0
    %2329 = vmatpush1.msra.mxu0 0.0
    %2330 = vmatprep.subr.mxu0 0.0
    %2331 = vmatpush1.msra.mxu0 0.0
    %2332 = vmatprep.subr.mxu0 0.0
    %2333 = vmatpush1.msra.mxu0 0.0
    %2334 = vmatprep.mubr.f32.mxu0 0.0
    %2335 = vmatmul.mubr.f32.gmra.mrb[0].mxu0 %v2268
    %v2336 = vpop.f32.mrb[0].mxu0
    %v2337 = vadd.f32 0.0, %v2336
    %v2338 = vpop.f32.mrb[0].mxu0
    %2339 = vdwg.mxu0
    %2342 = vrot.lane.b32.xlu0 %v1972, 32
    %v2343 = vpop.permute.xlu0 %2342
    %2344 = vrot.lane.b32.xlu0 %v2045, 32
    %v2345 = vpop.permute.xlu0 %2344
    %2350 = vrot.lane.b32.xlu0 %v2118, 64
    %v2351 = vpop.permute.xlu0 %2350
    %2352 = vrot.lane.b32.xlu0 %v2191, 64
    %v2353 = vpop.permute.xlu0 %2352
    %2358 = vrot.lane.b32.xlu0 %v2264, 96
    %v2359 = vpop.permute.xlu0 %2358
    %2360 = vrot.lane.b32.xlu0 %v2337, 96
    %v2361 = vpop.permute.xlu0 %2360
    %v2364 = vsel %vm425, %v1826, %v2343
    %v2365 = vsel %vm425, %v1899, %v2345
    %vm2366 = vcmask 523264
    %v2367 = vsel %vm2366, %v2364, %v2351
    %v2368 = vsel %vm2366, %v2365, %v2353
    %vm2369 = vcmask 785408
    %v2370 = vsel %vm2369, %v2367, %v2359
    %v2371 = vsel %vm2369, %v2368, %v2361
    %v2372 = vld [vmem:[%s7] sm:$0xff]
    %v2373 = vld [vmem:[%s7 + $0x8] sm:$0xff]
    %v2374 = vld [vmem:[%s7 + $0x10] sm:$0xff]
    %v2375 = vld [vmem:[%s7 + $0x18] sm:$0xff]
    %v2376 = vld [vmem:[%s7 + $0x20] sm:$0xff]
    %v2377 = vld [vmem:[%s7 + $0x28] sm:$0xff]
    %v2378 = vld [vmem:[%s7 + $0x30] sm:$0xff]
    %v2379 = vld [vmem:[%s7 + $0x38] sm:$0xff]
    %v2380 = vld [vmem:[%s7 + $0x40] sm:$0xff]
    %v2381 = vld [vmem:[%s7 + $0x48] sm:$0xff]
    %v2382 = vld [vmem:[%s7 + $0x50] sm:$0xff]
    %v2383 = vld [vmem:[%s7 + $0x58] sm:$0xff]
    %v2384 = vld [vmem:[%s7 + $0x60] sm:$0xff]
    %v2385 = vld [vmem:[%s7 + $0x68] sm:$0xff]
    %v2386 = vld [vmem:[%s7 + $0x70] sm:$0xff]
    %v2387 = vld [vmem:[%s7 + $0x78] sm:$0xff]
    %v2388 = vld [vmem:[%s8] sm:$0x1]
    %v2390 = vlaneseq
    %v2391 = vshrl.u32 %v2390, 7
    %v2392 = vsub.s32 0, %v2391
    %v2393 = vrot.slane %v2388, %v2392
    %2395 = vmatprep.subr.mxu0 0.0
    %2396 = vmatpush1.msra.mxu0 %v2372
    %2397 = vmatprep.subr.mxu0 0.0
    %2398 = vmatpush1.msra.mxu0 %v2373
    %2399 = vmatprep.subr.mxu0 0.0
    %2400 = vmatpush1.msra.mxu0 %v2374
    %2401 = vmatprep.subr.mxu0 0.0
    %2402 = vmatpush1.msra.mxu0 %v2375
    %2403 = vmatprep.subr.mxu0 0.0
    %2404 = vmatpush1.msra.mxu0 %v2376
    %2405 = vmatprep.subr.mxu0 0.0
    %2406 = vmatpush1.msra.mxu0 %v2377
    %2407 = vmatprep.subr.mxu0 0.0
    %2408 = vmatpush1.msra.mxu0 %v2378
    %2409 = vmatprep.subr.mxu0 0.0
    %2410 = vmatpush1.msra.mxu0 %v2379
    %2411 = vmatprep.subr.mxu0 0.0
    %2412 = vmatpush1.msra.mxu0 %v2380
    %2413 = vmatprep.subr.mxu0 0.0
    %2414 = vmatpush1.msra.mxu0 %v2381
    %2415 = vmatprep.subr.mxu0 0.0
    %2416 = vmatpush1.msra.mxu0 %v2382
    %2417 = vmatprep.subr.mxu0 0.0
    %2418 = vmatpush1.msra.mxu0 %v2383
    %2419 = vmatprep.subr.mxu0 0.0
    %2420 = vmatpush1.msra.mxu0 %v2384
    %2421 = vmatprep.subr.mxu0 0.0
    %2422 = vmatpush1.msra.mxu0 %v2385
    %2423 = vmatprep.subr.mxu0 0.0
    %2424 = vmatpush1.msra.mxu0 %v2386
    %2425 = vmatprep.subr.mxu0 0.0
    %2426 = vmatpush1.msra.mxu0 %v2387
    %2427 = vmatprep.subr.mxu0 0.0
    %2428 = vmatpush1.msra.mxu0 0.0
    %2429 = vmatprep.subr.mxu0 0.0
    %2430 = vmatpush1.msra.mxu0 0.0
    %2431 = vmatprep.subr.mxu0 0.0
    %2432 = vmatpush1.msra.mxu0 0.0
    %2433 = vmatprep.subr.mxu0 0.0
    %2434 = vmatpush1.msra.mxu0 0.0
    %2435 = vmatprep.subr.mxu0 0.0
    %2436 = vmatpush1.msra.mxu0 0.0
    %2437 = vmatprep.subr.mxu0 0.0
    %2438 = vmatpush1.msra.mxu0 0.0
    %2439 = vmatprep.subr.mxu0 0.0
    %2440 = vmatpush1.msra.mxu0 0.0
    %2441 = vmatprep.subr.mxu0 0.0
    %2442 = vmatpush1.msra.mxu0 0.0
    %2443 = vmatprep.subr.mxu0 0.0
    %2444 = vmatpush1.msra.mxu0 0.0
    %2445 = vmatprep.subr.mxu0 0.0
    %2446 = vmatpush1.msra.mxu0 0.0
    %2447 = vmatprep.subr.mxu0 0.0
    %2448 = vmatpush1.msra.mxu0 0.0
    %2449 = vmatprep.subr.mxu0 0.0
    %2450 = vmatpush1.msra.mxu0 0.0
    %2451 = vmatprep.subr.mxu0 0.0
    %2452 = vmatpush1.msra.mxu0 0.0
    %2453 = vmatprep.subr.mxu0 0.0
    %2454 = vmatpush1.msra.mxu0 0.0
    %2455 = vmatprep.subr.mxu0 0.0
    %2456 = vmatpush1.msra.mxu0 0.0
    %2457 = vmatprep.subr.mxu0 0.0
    %2458 = vmatpush1.msra.mxu0 0.0
    %2459 = vmatprep.mubr.f32.mxu0 0.0
    %2460 = vmatmul.mubr.f32.gmra.mrb[0].mxu0 %v2370
    %v2461 = vpop.f32.mrb[0].mxu0
    %v2462 = vadd.f32 %v2393, %v2461
    %v2463 = vpop.f32.mrb[0].mxu0
    %2464 = vmatprep.mubr.f32.mxu0 0.0
    %2465 = vmatmul.mubr.f32.gmra.mrb[0].mxu0 %v2371
    %v2466 = vpop.f32.mrb[0].mxu0
    %v2467 = vadd.f32 %v2393, %v2466
    %v2468 = vpop.f32.mrb[0].mxu0
    %2469 = vdwg.mxu0
    %v2470 = vadd.f32 %v72, %v2462
    %v2471 = vadd.f32 %v73, %v2467
    %2472 = vst [vmem:[#allocation8] sm:$0xff] %v2470
    %2473 = vst [vmem:[#allocation8 + $0x8] sm:$0xff] %v2471
    // Predicated region
    $region50: #{tpu_custom_call.1} parent=1 // pred_check
      _
    $region51: #{tpu_custom_call.1} parent=1 // pred_check_branch
      %2475 = sbr.rel (0) target = $region53
    $region52: #{tpu_custom_call.1} parent=1 // pred_region
      %s2477 = ssub.s32 256, 256
      %2478 = vsyncadd [#allocation4], %s2477
      %s2479 = sshll.u32 [#allocation8], 4
      %s2480 = int_to_ptr.vmem [resolvable:$true] %s2479
      %2485 = dma.vmem_to_hbm [thread:$0]  %s2480, 256, %s9, [#allocation4], 128, 128, 8
    $region53: #{tpu_custom_call.1} parent=1 // pred_fallthru
      _
    // Predicated region
    $region54: #{tpu_custom_call.1} parent=1 // pred_check
      _
    $region55: #{tpu_custom_call.1} parent=1 // pred_check_branch
      %2487 = sbr.rel (0) target = $region57
    $region56: #{tpu_custom_call.1} parent=1 // pred_region
      %2488 = dma.done [#allocation4], 256
    $region57: #{tpu_custom_call.1} parent=1 // pred_fallthru
      _
    %2489 = vsyncpa [#allocation3], 1
    %2490 = vsyncpa [#allocation6], 1
    %2491 = vsyncpa [#allocation4], 1

</llo_original>
